<compile_context>
chip_gen: v7x
topology: tpu7x:2x2x1
jax: 0.10.0
libtpu: 0.0.40
codegen_flags: <defaults>
</compile_context>

<pallas_src>
import functools

import jax
import jax.numpy as jnp
import numpy as np
from jax.experimental import pallas as pl
from jax.experimental.pallas import tpu as pltpu


# ----------------------------------------------------------------------------
# Fused Pallas kernel: TB samples (TB*F stacked frame rows) per grid step.
# ----------------------------------------------------------------------------
def _lenet5_kernel(frames_ref, fb_ref, sprev_ref, snext_ref,
                   w1_ref, b1_ref, p1_ref, w2_ref, b2_ref,
                   headw_ref, headb_ref,
                   spec_ref, pred_ref, *, tb, frames_per_sample, freq):
    f32 = jnp.float32
    dot = functools.partial(jnp.dot, preferred_element_type=f32)
    m = tb * frames_per_sample

    # ---- spectrogram front-end: fused [cos | sin] filterbank matmul ---------
    # TODO(synk): the original model uses an nnAudio spectrogram front-end
    # (self.spec_layer); stood in for by a deterministic cos/sin power
    # filterbank over non-overlapping frames.  precision=HIGHEST could be set
    # on this dot if tighter-than-2e-2 accuracy on near-zero power bins were
    # ever required.
    y = dot(frames_ref[...], fb_ref[...])               # (M, 2*freq)
    cp = y[:, :freq]
    sp = y[:, freq:]
    x = jnp.log(cp * cp + sp * sp + 1e-8)               # (M, freq)

    # ---- per-sample min-max normalization (Normalization layer) -------------
    x3 = x.reshape(tb, frames_per_sample, freq)         # layout-free (F % 8 == 0)
    mx = jnp.max(jnp.max(x3, axis=2, keepdims=True), axis=1, keepdims=True)
    mn = jnp.min(jnp.min(x3, axis=2, keepdims=True), axis=1, keepdims=True)
    rng = mx - mn
    safe = jnp.where(rng == 0.0, 1.0, rng)
    spec = jnp.where(rng == 0.0, 0.0, (x3 - mn) / safe).reshape(m, freq)
    spec_ref[...] = spec.astype(spec_ref.dtype)

    # ---- CNN: conv3x3(SAME) + ReLU (+ AvgPool(1,2)) as stacked MXU matmuls ---
    sprev = sprev_ref[...]     # per-sample block-diagonal row shifts (M, M)
    snext = snext_ref[...]

    def conv3x3_relu(xm, wstk_ref, brow_ref):
        # X3 = [x(h-1) | x(h) | x(h+1)] along features, one fused band matmul.
        x3w = jnp.concatenate([dot(sprev, xm), xm, dot(snext, xm)], axis=1)
        return jnp.maximum(dot(x3w, wstk_ref[...]) + brow_ref[...], 0.0)

    h1 = conv3x3_relu(spec, w1_ref, b1_ref)              # (M, W*ch)
    h1 = dot(h1, p1_ref[...])                            # (M, W/2*ch)  AvgPool(1,2)
    h2 = conv3x3_relu(h1, w2_ref, b2_ref)                # (M, W/2*ch)

    # ---- head: AvgPool#2 + fc1..fc3 + classifier collapsed into one matmul --
    pred = dot(h2, headw_ref[...]) + headb_ref[...]      # (M, out_pad) lane-dense
    pred_ref[...] = pred.astype(pred_ref.dtype)


# ----------------------------------------------------------------------------
# Wrapper
# ----------------------------------------------------------------------------
def _choose_batch_tile(batch, frames, target_rows=256):
    """Largest divisor of `batch` with tile*frames <= target_rows while keeping
    the grid length >= 2 (v7x has two TensorCores).  target_rows=256 fills a
    v6e/v7x MXU pass; 128 would be the v5e-optimal target and also works."""
    best = 1
    for d in range(1, batch + 1):
        if batch % d:
            continue
        if d * frames > target_rows:
            continue
        if batch >= 2 and batch // d < 2:
            continue
        best = d
    return best


def lenet5_forward(x, kparams, n_fft, batch_tile=None):
    """x: (B, T) raw audio.  kparams: output of prepare_params()."""
    B, T = x.shape
    F = T // n_fft
    D = kparams["filterbank"].shape[1] // 2
    out_dim = kparams["out_dim"]
    out_pad = kparams["head_w"].shape[1]

    tb = _choose_batch_tile(B, F) if batch_tile is None else batch_tile
    assert B % tb == 0, "batch must be divisible by the batch tile"
    grid_len = B // tb
    M = tb * F

    frames = x[:, :F * n_fft].reshape(B * F, n_fft).astype(jnp.float32)

    # Per-sample block-diagonal row-shift matrices: SAME zero padding along
    # the frame (H) axis without leaking rows across samples stacked in M.
    r = np.arange(M)
    same = (r[:, None] // F) == (r[None, :] // F)
    s_prev = jnp.asarray((r[None, :] == r[:, None] - 1) & same, jnp.float32)
    s_next = jnp.asarray((r[None, :] == r[:, None] + 1) & same, jnp.float32)

    weights = (kparams["filterbank"], s_prev, s_next,
               kparams["w1_stk"], kparams["b1_row"], kparams["pool1"],
               kparams["w2_stk"], kparams["b2_row"],
               kparams["head_w"], kparams["head_b"])

    def _resident(w):   # full-array block, stays resident in VMEM across grid
        return pl.BlockSpec(w.shape, lambda b, _nd=w.ndim: (0,) * _nd)

    kernel = functools.partial(_lenet5_kernel, tb=tb, frames_per_sample=F,
                               freq=D)

    spec_flat, pred_flat = pl.pallas_call(
        kernel,
        grid=(grid_len,),
        in_specs=[pl.BlockSpec((M, n_fft), lambda b: (b, 0))]
                 + [_resident(w) for w in weights],
        out_specs=(pl.BlockSpec((M, D), lambda b: (b, 0)),
                   pl.BlockSpec((M, out_pad), lambda b: (b, 0))),
        out_shape=(jax.ShapeDtypeStruct((B * F, D), jnp.float32),
                   jax.ShapeDtypeStruct((B * F, out_pad), jnp.float32)),
        compiler_params=pltpu.CompilerParams(dimension_semantics=("parallel",)),
    )(frames, *weights)

    spec = spec_flat.reshape(B, F, D)
    pred = pred_flat.reshape(B, F, out_pad)[:, :, :out_dim]
    return {"prediction": pred, "spectrogram": spec}


# ----------------------------------------------------------------------------
# One-time weight re-layout (hoisted out of the forward path)
# ----------------------------------------------------------------------------
def _conv_to_banded_stacked(w, width):
    """(Cout, Cin, 3, 3) torch conv weight -> (3*width*Cin, width*Cout) stacked
    banded matrix: rows are the [kh=0 | kh=1 | kh=2] taps, with the SAME zero
    padding along W encoded in the band structure."""
    win = jnp.arange(width)[:, None]
    wout = jnp.arange(width)[None, :]
    dw = win - wout + 1
    valid = (dw >= 0) & (dw <= 2)
    dw_c = jnp.clip(dw, 0, 2)
    mats = []
    for kh in range(3):
        wk = jnp.transpose(w[:, :, kh, :], (2, 1, 0))        # (kw, cin, cout)
        m = wk[dw_c]                                         # (W, W, cin, cout)
        m = jnp.where(valid[:, :, None, None], m, 0.0)
        m = jnp.transpose(m, (0, 2, 1, 3)).reshape(width * w.shape[1],
                                                   width * w.shape[0])
        mats.append(m)
    return jnp.concatenate(mats, axis=0).astype(jnp.float32)


def _pool_matrix(width, ch):
    """(width*ch, width//2*ch) matrix implementing AvgPool2d((1, 2)) on the
    w-major / c-minor flattened feature axis."""
    rows = jnp.arange(width * ch)
    cols = jnp.arange((width // 2) * ch)
    keep = (((rows[:, None] // ch) // 2) == (cols[None, :] // ch)) & \
           ((rows[:, None] % ch) == (cols[None, :] % ch))
    return keep.astype(jnp.float32) * 0.5


def prepare_params(params, *, input_dim, hidden_dim):
    hi = jax.lax.Precision.HIGHEST
    ch = hidden_dim // 16
    w_mid = input_dim // 2          # width after first AvgPool(1, 2)
    w_out = input_dim // 4          # width after second AvgPool(1, 2)

    # Fused [cos | sin] filterbank: one matmul in the kernel instead of two.
    fb = jnp.concatenate([params["cos_basis"], params["sin_basis"]],
                         axis=1).astype(jnp.float32)

    # fc1 row permutation: kernel features per frame are (w, c) w-major;
    # PyTorch's x.transpose(1, 2).flatten(2) is (c, w) c-major.
    idx = jnp.arange(ch * w_out)
    perm = (idx % ch) * w_out + idx // ch

    # fc1 -> fc2 -> fc3 -> classifier are consecutive Linear layers with no
    # nonlinearity between them: collapse them (plus AvgPool #2) into a single
    # weight/bias at prepare time, then zero-pad to a 128-lane-dense output.
    hw = params["fc1_w"][perm, :].astype(jnp.float32)
    hb = params["fc1_b"].astype(jnp.float32)
    for wname, bname in (("fc2_w", "fc2_b"), ("fc3_w", "fc3_b"),
                         ("cls_w", "cls_b")):
        w = params[wname].astype(jnp.float32)
        hw = jnp.dot(hw, w, precision=hi)
        hb = jnp.dot(hb, w, precision=hi) + params[bname].astype(jnp.float32)
    pool2 = _pool_matrix(w_mid, ch)
    hw = jnp.dot(pool2, hw, precision=hi)                 # fold AvgPool #2
    out_dim = hw.shape[1]
    out_pad = -(-out_dim // 128) * 128                    # lane-dense stores
    hw = jnp.pad(hw, ((0, 0), (0, out_pad - out_dim)))
    hb = jnp.pad(hb, (0, out_pad - out_dim)).reshape(1, -1)

    return dict(
        filterbank=fb,
        w1_stk=_conv_to_banded_stacked(params["conv1_w"], input_dim),
        b1_row=jnp.tile(params["conv1_b"], input_dim).reshape(1, -1).astype(jnp.float32),
        pool1=_pool_matrix(input_dim, ch),
        w2_stk=_conv_to_banded_stacked(params["conv2_w"], w_mid),
        b2_row=jnp.tile(params["conv2_b"], w_mid).reshape(1, -1).astype(jnp.float32),
        head_w=hw, head_b=hb,
        out_dim=out_dim,
    )


# ----------------------------------------------------------------------------
# Deterministic parameter init (shapes follow LeNet_5.__init__, non-CQT branch)
# ----------------------------------------------------------------------------
def init_params(key, *, n_fft, input_dim, hidden_dim, hidden_dim2,
                hidden_dim3, output_dim):
    ch = hidden_dim // 16
    input_dim_to_fc = ch * (input_dim // 4)

    def lin(k, fan_in, fan_out):
        kw, kb = jax.random.split(k)
        bound = 1.0 / jnp.sqrt(jnp.float32(fan_in))
        w = jax.random.uniform(kw, (fan_in, fan_out), jnp.float32, -bound, bound)
        b = jax.random.uniform(kb, (fan_out,), jnp.float32, -bound, bound)
        return w, b

    def conv(k, cin, cout):
        kw, kb = jax.random.split(k)
        bound = 1.0 / jnp.sqrt(jnp.float32(cin * 9))
        w = jax.random.uniform(kw, (cout, cin, 3, 3), jnp.float32, -bound, bound)
        b = jax.random.uniform(kb, (cout,), jnp.float32, -bound, bound)
        return w, b

    k = jax.random.split(key, 6)
    conv1_w, conv1_b = conv(k[0], 1, ch)
    conv2_w, conv2_b = conv(k[1], ch, ch)
    fc1_w, fc1_b = lin(k[2], input_dim_to_fc, hidden_dim2)
    fc2_w, fc2_b = lin(k[3], hidden_dim2, hidden_dim3)
    fc3_w, fc3_b = lin(k[4], hidden_dim3, hidden_dim)
    cls_w, cls_b = lin(k[5], hidden_dim, output_dim)

    # TODO(synk): the original model uses an nnAudio spectrogram front-end
    # (self.spec_layer); stood in for here by a deterministic cos/sin power
    # filterbank over non-overlapping frames.
    t = jnp.arange(n_fft, dtype=jnp.float32)[:, None]
    f = jnp.arange(input_dim, dtype=jnp.float32)[None, :]
    ang = 2.0 * jnp.pi * t * f / n_fft
    cos_basis = jnp.cos(ang) / n_fft
    sin_basis = jnp.sin(ang) / n_fft

    return dict(
        cos_basis=cos_basis, sin_basis=sin_basis,
        conv1_w=conv1_w, conv1_b=conv1_b,
        conv2_w=conv2_w, conv2_b=conv2_b,
        fc1_w=fc1_w, fc1_b=fc1_b,
        fc2_w=fc2_w, fc2_b=fc2_b,
        fc3_w=fc3_w, fc3_b=fc3_b,
        cls_w=cls_w, cls_b=cls_b,
    )


# ----------------------------------------------------------------------------
# Pure-JAX reference (PyTorch semantics: im2col conv, separate fc layers)
# ----------------------------------------------------------------------------
def reference_forward(x, params, n_fft):
    hi = jax.lax.Precision.HIGHEST
    B, T = x.shape
    F = T // n_fft
    D = params["cos_basis"].shape[1]
    frames = x[:, :F * n_fft].reshape(B * F, n_fft).astype(jnp.float32)
    cp = jnp.dot(frames, params["cos_basis"], precision=hi)
    sp = jnp.dot(frames, params["sin_basis"], precision=hi)
    spec = jnp.log(cp ** 2 + sp ** 2 + 1e-8).reshape(B, F, D)
    mx = spec.max(axis=(1, 2), keepdims=True)
    mn = spec.min(axis=(1, 2), keepdims=True)
    rng = mx - mn
    spec = jnp.where(rng == 0.0, 0.0,
                     (spec - mn) / jnp.where(rng == 0.0, 1.0, rng))

    def conv3x3_relu(h, w, b):
        Bh, H, W, Cin = h.shape
        hpad = jnp.pad(h, ((0, 0), (1, 1), (1, 1), (0, 0)))
        cols = jnp.concatenate(
            [hpad[:, dh:dh + H, dw:dw + W, :]
             for dh in range(3) for dw in range(3)],
            axis=-1).reshape(Bh * H * W, 9 * Cin)
        wmat = jnp.transpose(w, (2, 3, 1, 0)).reshape(9 * Cin, -1)
        y = jnp.maximum(jnp.dot(cols, wmat, precision=hi) + b, 0.0)
        return y.reshape(Bh, H, W, -1)

    def pool_w2(h):
        Bh, H, W, C = h.shape
        return h.reshape(Bh, H, W // 2, 2, C).mean(axis=3)

    h = spec[..., None]
    h = pool_w2(conv3x3_relu(h, params["conv1_w"], params["conv1_b"]))
    h = pool_w2(conv3x3_relu(h, params["conv2_w"], params["conv2_b"]))
    Bh, H, W, C = h.shape
    z = jnp.transpose(h, (0, 1, 3, 2)).reshape(B * H, C * W)
    z = jnp.dot(z, params["fc1_w"], precision=hi) + params["fc1_b"]
    z = jnp.dot(z, params["fc2_w"], precision=hi) + params["fc2_b"]
    z = jnp.dot(z, params["fc3_w"], precision=hi) + params["fc3_b"]
    pred = (jnp.dot(z, params["cls_w"], precision=hi)
            + params["cls_b"]).reshape(B, H, -1)
    return {"prediction": pred, "spectrogram": spec}


if __name__ == "__main__":
    B = 8                   # small batch; batch-tiled to TB=4 -> grid=(2,)
    n_fft = 32
    n_frames = 8
    input_dim = 16          # freq bins produced by the spec layer
    hidden_dim = 64         # -> hidden_dim // 16 = 4 conv channels
    hidden_dim2 = 32
    hidden_dim3 = 32
    output_dim = 88         # module default

    key = jax.random.PRNGKey(0)
    kx, kp = jax.random.split(key)
    x = jax.random.normal(kx, (B, n_frames * n_fft), jnp.float32)
    params = init_params(
        kp, n_fft=n_fft, input_dim=input_dim, hidden_dim=hidden_dim,
        hidden_dim2=hidden_dim2, hidden_dim3=hidden_dim3, output_dim=output_dim,
    )
    kparams = prepare_params(params, input_dim=input_dim, hidden_dim=hidden_dim)

    fwd = jax.jit(lambda inp: lenet5_forward(inp, kparams, n_fft))
    out = fwd(x)
    jax.block_until_ready(out)

    assert out["prediction"].shape == (B, n_frames, output_dim)
    assert out["spectrogram"].shape == (B, n_frames, input_dim)

    ref = reference_forward(x, params, n_fft)
    np.testing.assert_allclose(np.asarray(out["spectrogram"]),
                               np.asarray(ref["spectrogram"]),
                               rtol=2e-2, atol=2e-2)
    np.testing.assert_allclose(np.asarray(out["prediction"]),
                               np.asarray(ref["prediction"]),
                               rtol=2e-2, atol=2e-2)
    print("KERNEL_OK")
</pallas_src>

<mosaic_0001>
module attributes {stable_mosaic.version = 11 : i64} {
  func.func @_lenet5_kernel(%arg0: i32, %arg1: memref<32x32xf32, #tpu.memory_space<vmem>>, %arg2: memref<32x32xf32, #tpu.memory_space<vmem>>, %arg3: memref<32x32xf32, #tpu.memory_space<vmem>>, %arg4: memref<32x32xf32, #tpu.memory_space<vmem>>, %arg5: memref<48x64xf32, #tpu.memory_space<vmem>>, %arg6: memref<1x64xf32, #tpu.memory_space<vmem>>, %arg7: memref<64x32xf32, #tpu.memory_space<vmem>>, %arg8: memref<96x32xf32, #tpu.memory_space<vmem>>, %arg9: memref<1x32xf32, #tpu.memory_space<vmem>>, %arg10: memref<32x128xf32, #tpu.memory_space<vmem>>, %arg11: memref<1x128xf32, #tpu.memory_space<vmem>>, %arg12: memref<32x16xf32, #tpu.memory_space<vmem>>, %arg13: memref<32x128xf32, #tpu.memory_space<vmem>>) attributes {dimension_semantics = [#tpu.dimension_semantics<parallel>], iteration_bounds = array<i64: 2>, scalar_prefetch = 0 : i64, scratch_operands = 0 : i64, tpu.core_type = #tpu.core_type<tc>, window_params = [{transform_indices = @transform_0, window_bounds = array<i64: 32, 32>}, {pipeline_mode = #tpu.pipeline_mode<synchronous>, transform_indices = @transform_1, window_bounds = array<i64: 32, 32>}, {pipeline_mode = #tpu.pipeline_mode<synchronous>, transform_indices = @transform_2, window_bounds = array<i64: 32, 32>}, {pipeline_mode = #tpu.pipeline_mode<synchronous>, transform_indices = @transform_3, window_bounds = array<i64: 32, 32>}, {pipeline_mode = #tpu.pipeline_mode<synchronous>, transform_indices = @transform_4, window_bounds = array<i64: 48, 64>}, {pipeline_mode = #tpu.pipeline_mode<synchronous>, transform_indices = @transform_5, window_bounds = array<i64: 1, 64>}, {pipeline_mode = #tpu.pipeline_mode<synchronous>, transform_indices = @transform_6, window_bounds = array<i64: 64, 32>}, {pipeline_mode = #tpu.pipeline_mode<synchronous>, transform_indices = @transform_7, window_bounds = array<i64: 96, 32>}, {pipeline_mode = #tpu.pipeline_mode<synchronous>, transform_indices = @transform_8, window_bounds = array<i64: 1, 32>}, {pipeline_mode = #tpu.pipeline_mode<synchronous>, transform_indices = @transform_9, window_bounds = array<i64: 32, 128>}, {pipeline_mode = #tpu.pipeline_mode<synchronous>, transform_indices = @transform_10, window_bounds = array<i64: 1, 128>}, {transform_indices = @transform_11, window_bounds = array<i64: 32, 16>}, {transform_indices = @transform_12, window_bounds = array<i64: 32, 128>}]} {
    %c0 = arith.constant 0 : index
    %c0_0 = arith.constant 0 : index
    %0 = vector.load %arg1[%c0, %c0_0] : memref<32x32xf32, #tpu.memory_space<vmem>>, vector<32x32xf32>
    %c0_1 = arith.constant 0 : index
    %c0_2 = arith.constant 0 : index
    %1 = vector.load %arg2[%c0_1, %c0_2] : memref<32x32xf32, #tpu.memory_space<vmem>>, vector<32x32xf32>
    %cst = arith.constant dense<0.000000e+00> : vector<32x32xf32>
    %2 = tpu.matmul %0, %1, %cst {dimension_numbers = #tpu.dot_dimension_numbers<[1], [0], [0], [1], [0, 0, 1, 1], [], []>} : vector<32x32xf32>, vector<32x32xf32>, vector<32x32xf32> -> vector<32x32xf32>
    %3 = vector.extract_strided_slice %2 {offsets = [0, 0], sizes = [32, 16], strides = [1, 1]} : vector<32x32xf32> to vector<32x16xf32>
    %4 = vector.extract_strided_slice %2 {offsets = [0, 16], sizes = [32, 16], strides = [1, 1]} : vector<32x32xf32> to vector<32x16xf32>
    %5 = arith.mulf %3, %3 : vector<32x16xf32>
    %6 = arith.mulf %4, %4 : vector<32x16xf32>
    %7 = arith.addf %5, %6 : vector<32x16xf32>
    %cst_3 = arith.constant 9.99999993E-9 : f32
    %8 = vector.broadcast %cst_3 : f32 to vector<32x16xf32>
    %9 = arith.addf %7, %8 : vector<32x16xf32>
    %10 = math.log %9 : vector<32x16xf32>
    %11 = vector.shape_cast %10 : vector<32x16xf32> to vector<4x8x16xf32>
    %cst_4 = arith.constant dense<0xFF800000> : vector<4x8xf32>
    %12 = vector.multi_reduction <maximumf>, %11, %cst_4 [2] : vector<4x8x16xf32> to vector<4x8xf32>
    %13 = vector.shape_cast %12 : vector<4x8xf32> to vector<4x8x1xf32>
    %cst_5 = arith.constant dense<0xFF800000> : vector<4x1xf32>
    %14 = vector.multi_reduction <maximumf>, %13, %cst_5 [1] : vector<4x8x1xf32> to vector<4x1xf32>
    %15 = vector.shape_cast %14 : vector<4x1xf32> to vector<4x1x1xf32>
    %cst_6 = arith.constant dense<0x7F800000> : vector<4x8xf32>
    %16 = vector.multi_reduction <minimumf>, %11, %cst_6 [2] : vector<4x8x16xf32> to vector<4x8xf32>
    %17 = vector.shape_cast %16 : vector<4x8xf32> to vector<4x8x1xf32>
    %cst_7 = arith.constant dense<0x7F800000> : vector<4x1xf32>
    %18 = vector.multi_reduction <minimumf>, %17, %cst_7 [1] : vector<4x8x1xf32> to vector<4x1xf32>
    %19 = vector.shape_cast %18 : vector<4x1xf32> to vector<4x1x1xf32>
    %20 = arith.subf %15, %19 : vector<4x1x1xf32>
    %cst_8 = arith.constant 0.000000e+00 : f32
    %21 = vector.broadcast %cst_8 : f32 to vector<4x1x1xf32>
    %22 = arith.cmpf oeq, %20, %21 : vector<4x1x1xf32>
    %cst_9 = arith.constant 1.000000e+00 : f32
    %23 = vector.broadcast %cst_9 : f32 to vector<4x1x1xf32>
    %24 = arith.select %22, %23, %20 : vector<4x1x1xi1>, vector<4x1x1xf32>
    %cst_10 = arith.constant 0.000000e+00 : f32
    %25 = vector.broadcast %cst_10 : f32 to vector<4x1x1xf32>
    %26 = arith.cmpf oeq, %20, %25 : vector<4x1x1xf32>
    %27 = vector.broadcast %19 : vector<4x1x1xf32> to vector<4x8x16xf32>
    %28 = arith.subf %11, %27 : vector<4x8x16xf32>
    %29 = vector.broadcast %24 : vector<4x1x1xf32> to vector<4x8x16xf32>
    %30 = arith.divf %28, %29 : vector<4x8x16xf32>
    %cst_11 = arith.constant 0.000000e+00 : f32
    %31 = vector.shape_cast %26 : vector<4x1x1xi1> to vector<4x1x1xi1>
    %32 = vector.broadcast %31 : vector<4x1x1xi1> to vector<4x8x16xi1>
    %33 = vector.broadcast %cst_11 : f32 to vector<4x8x16xf32>
    %34 = arith.select %32, %33, %30 : vector<4x8x16xi1>, vector<4x8x16xf32>
    %35 = vector.shape_cast %34 : vector<4x8x16xf32> to vector<32x16xf32>
    %c0_12 = arith.constant 0 : index
    %c0_13 = arith.constant 0 : index
    %36 = vector.load %arg12[%c0_12, %c0_13] : memref<32x16xf32, #tpu.memory_space<vmem>>, vector<32x16xf32>
    tpu.vector_store %arg12[%c0_12, %c0_13], %35 {strides = array<i32>} : memref<32x16xf32, #tpu.memory_space<vmem>>, vector<32x16xf32>,
    %c0_14 = arith.constant 0 : index
    %c0_15 = arith.constant 0 : index
    %37 = vector.load %arg3[%c0_14, %c0_15] : memref<32x32xf32, #tpu.memory_space<vmem>>, vector<32x32xf32>
    %c0_16 = arith.constant 0 : index
    %c0_17 = arith.constant 0 : index
    %38 = vector.load %arg4[%c0_16, %c0_17] : memref<32x32xf32, #tpu.memory_space<vmem>>, vector<32x32xf32>
    %cst_18 = arith.constant dense<0.000000e+00> : vector<32x16xf32>
    %39 = tpu.matmul %37, %35, %cst_18 {dimension_numbers = #tpu.dot_dimension_numbers<[1], [0], [0], [1], [0, 0, 1, 1], [], []>} : vector<32x32xf32>, vector<32x16xf32>, vector<32x16xf32> -> vector<32x16xf32>
    %cst_19 = arith.constant dense<0.000000e+00> : vector<32x16xf32>
    %40 = tpu.matmul %38, %35, %cst_19 {dimension_numbers = #tpu.dot_dimension_numbers<[1], [0], [0], [1], [0, 0, 1, 1], [], []>} : vector<32x32xf32>, vector<32x16xf32>, vector<32x16xf32> -> vector<32x16xf32>
    %41 = tpu.concatenate %39, %35, %40 in 1 : vector<32x16xf32>, vector<32x16xf32>, vector<32x16xf32> -> vector<32x48xf32>
    %c0_20 = arith.constant 0 : index
    %c0_21 = arith.constant 0 : index
    %42 = vector.load %arg5[%c0_20, %c0_21] : memref<48x64xf32, #tpu.memory_space<vmem>>, vector<48x64xf32>
    %cst_22 = arith.constant dense<0.000000e+00> : vector<32x64xf32>
    %43 = tpu.matmul %41, %42, %cst_22 {dimension_numbers = #tpu.dot_dimension_numbers<[1], [0], [0], [1], [0, 0, 1, 1], [], []>} : vector<32x48xf32>, vector<48x64xf32>, vector<32x64xf32> -> vector<32x64xf32>
    %c0_23 = arith.constant 0 : index
    %c0_24 = arith.constant 0 : index
    %44 = vector.load %arg6[%c0_23, %c0_24] : memref<1x64xf32, #tpu.memory_space<vmem>>, vector<1x64xf32>
    %45 = vector.broadcast %44 : vector<1x64xf32> to vector<32x64xf32>
    %46 = arith.addf %43, %45 : vector<32x64xf32>
    %cst_25 = arith.constant 0.000000e+00 : f32
    %47 = vector.broadcast %cst_25 : f32 to vector<32x64xf32>
    %48 = arith.maximumf %46, %47 : vector<32x64xf32>
    %c0_26 = arith.constant 0 : index
    %c0_27 = arith.constant 0 : index
    %49 = vector.load %arg7[%c0_26, %c0_27] : memref<64x32xf32, #tpu.memory_space<vmem>>, vector<64x32xf32>
    %cst_28 = arith.constant dense<0.000000e+00> : vector<32x32xf32>
    %50 = tpu.matmul %48, %49, %cst_28 {dimension_numbers = #tpu.dot_dimension_numbers<[1], [0], [0], [1], [0, 0, 1, 1], [], []>} : vector<32x64xf32>, vector<64x32xf32>, vector<32x32xf32> -> vector<32x32xf32>
    %cst_29 = arith.constant dense<0.000000e+00> : vector<32x32xf32>
    %51 = tpu.matmul %37, %50, %cst_29 {dimension_numbers = #tpu.dot_dimension_numbers<[1], [0], [0], [1], [0, 0, 1, 1], [], []>} : vector<32x32xf32>, vector<32x32xf32>, vector<32x32xf32> -> vector<32x32xf32>
    %cst_30 = arith.constant dense<0.000000e+00> : vector<32x32xf32>
    %52 = tpu.matmul %38, %50, %cst_30 {dimension_numbers = #tpu.dot_dimension_numbers<[1], [0], [0], [1], [0, 0, 1, 1], [], []>} : vector<32x32xf32>, vector<32x32xf32>, vector<32x32xf32> -> vector<32x32xf32>
    %53 = tpu.concatenate %51, %50, %52 in 1 : vector<32x32xf32>, vector<32x32xf32>, vector<32x32xf32> -> vector<32x96xf32>
    %c0_31 = arith.constant 0 : index
    %c0_32 = arith.constant 0 : index
    %54 = vector.load %arg8[%c0_31, %c0_32] : memref<96x32xf32, #tpu.memory_space<vmem>>, vector<96x32xf32>
    %cst_33 = arith.constant dense<0.000000e+00> : vector<32x32xf32>
    %55 = tpu.matmul %53, %54, %cst_33 {dimension_numbers = #tpu.dot_dimension_numbers<[1], [0], [0], [1], [0, 0, 1, 1], [], []>} : vector<32x96xf32>, vector<96x32xf32>, vector<32x32xf32> -> vector<32x32xf32>
    %c0_34 = arith.constant 0 : index
    %c0_35 = arith.constant 0 : index
    %56 = vector.load %arg9[%c0_34, %c0_35] : memref<1x32xf32, #tpu.memory_space<vmem>>, vector<1x32xf32>
    %57 = vector.broadcast %56 : vector<1x32xf32> to vector<32x32xf32>
    %58 = arith.addf %55, %57 : vector<32x32xf32>
    %cst_36 = arith.constant 0.000000e+00 : f32
    %59 = vector.broadcast %cst_36 : f32 to vector<32x32xf32>
    %60 = arith.maximumf %58, %59 : vector<32x32xf32>
    %c0_37 = arith.constant 0 : index
    %c0_38 = arith.constant 0 : index
    %61 = vector.load %arg10[%c0_37, %c0_38] : memref<32x128xf32, #tpu.memory_space<vmem>>, vector<32x128xf32>
    %cst_39 = arith.constant dense<0.000000e+00> : vector<32x128xf32>
    %62 = tpu.matmul %60, %61, %cst_39 {dimension_numbers = #tpu.dot_dimension_numbers<[1], [0], [0], [1], [0, 0, 1, 1], [], []>} : vector<32x32xf32>, vector<32x128xf32>, vector<32x128xf32> -> vector<32x128xf32>
    %c0_40 = arith.constant 0 : index
    %c0_41 = arith.constant 0 : index
    %63 = vector.load %arg11[%c0_40, %c0_41] : memref<1x128xf32, #tpu.memory_space<vmem>>, vector<1x128xf32>
    %64 = vector.broadcast %63 : vector<1x128xf32> to vector<32x128xf32>
    %65 = arith.addf %62, %64 : vector<32x128xf32>
    %c0_42 = arith.constant 0 : index
    %c0_43 = arith.constant 0 : index
    %66 = vector.load %arg13[%c0_42, %c0_43] : memref<32x128xf32, #tpu.memory_space<vmem>>, vector<32x128xf32>
    tpu.vector_store %arg13[%c0_42, %c0_43], %65 {strides = array<i32>} : memref<32x128xf32, #tpu.memory_space<vmem>>, vector<32x128xf32>,
    return
  }
  func.func @transform_0(%arg0: i32) -> (i32, i32) {
    %c0_i32 = arith.constant 0 : i32
    %c0_i32_0 = arith.constant 0 : i32
    return %arg0, %c0_i32 : i32, i32
  }
  func.func @transform_1(%arg0: i32) -> (i32, i32) {
    %c0_i32 = arith.constant 0 : i32
    %c0_i32_0 = arith.constant 0 : i32
    %c0_i32_1 = arith.constant 0 : i32
    return %c0_i32, %c0_i32_0 : i32, i32
  }
  func.func @transform_2(%arg0: i32) -> (i32, i32) {
    %c0_i32 = arith.constant 0 : i32
    %c0_i32_0 = arith.constant 0 : i32
    %c0_i32_1 = arith.constant 0 : i32
    return %c0_i32, %c0_i32_0 : i32, i32
  }
  func.func @transform_3(%arg0: i32) -> (i32, i32) {
    %c0_i32 = arith.constant 0 : i32
    %c0_i32_0 = arith.constant 0 : i32
    %c0_i32_1 = arith.constant 0 : i32
    return %c0_i32, %c0_i32_0 : i32, i32
  }
  func.func @transform_4(%arg0: i32) -> (i32, i32) {
    %c0_i32 = arith.constant 0 : i32
    %c0_i32_0 = arith.constant 0 : i32
    %c0_i32_1 = arith.constant 0 : i32
    return %c0_i32, %c0_i32_0 : i32, i32
  }
  func.func @transform_5(%arg0: i32) -> (i32, i32) {
    %c0_i32 = arith.constant 0 : i32
    %c0_i32_0 = arith.constant 0 : i32
    %c0_i32_1 = arith.constant 0 : i32
    return %c0_i32, %c0_i32_0 : i32, i32
  }
  func.func @transform_6(%arg0: i32) -> (i32, i32) {
    %c0_i32 = arith.constant 0 : i32
    %c0_i32_0 = arith.constant 0 : i32
    %c0_i32_1 = arith.constant 0 : i32
    return %c0_i32, %c0_i32_0 : i32, i32
  }
  func.func @transform_7(%arg0: i32) -> (i32, i32) {
    %c0_i32 = arith.constant 0 : i32
    %c0_i32_0 = arith.constant 0 : i32
    %c0_i32_1 = arith.constant 0 : i32
    return %c0_i32, %c0_i32_0 : i32, i32
  }
  func.func @transform_8(%arg0: i32) -> (i32, i32) {
    %c0_i32 = arith.constant 0 : i32
    %c0_i32_0 = arith.constant 0 : i32
    %c0_i32_1 = arith.constant 0 : i32
    return %c0_i32, %c0_i32_0 : i32, i32
  }
  func.func @transform_9(%arg0: i32) -> (i32, i32) {
    %c0_i32 = arith.constant 0 : i32
    %c0_i32_0 = arith.constant 0 : i32
    %c0_i32_1 = arith.constant 0 : i32
    return %c0_i32, %c0_i32_0 : i32, i32
  }
  func.func @transform_10(%arg0: i32) -> (i32, i32) {
    %c0_i32 = arith.constant 0 : i32
    %c0_i32_0 = arith.constant 0 : i32
    %c0_i32_1 = arith.constant 0 : i32
    return %c0_i32, %c0_i32_0 : i32, i32
  }
  func.func @transform_11(%arg0: i32) -> (i32, i32) {
    %c0_i32 = arith.constant 0 : i32
    %c0_i32_0 = arith.constant 0 : i32
    return %arg0, %c0_i32 : i32, i32
  }
  func.func @transform_12(%arg0: i32) -> (i32, i32) {
    %c0_i32 = arith.constant 0 : i32
    %c0_i32_0 = arith.constant 0 : i32
    return %arg0, %c0_i32 : i32, i32
  }
}

</mosaic_0001>

<llo_original>
// kernel: _lambda_.1
$region0: #{_lambda_.1}
  #allocation0 [shape = 'u32[]', space=smem, size = 0x4, offset = 0x4, fixed_abs, tag = 'smem constant byte address 0x4 - core index']
  #allocation1 [shape = 'u32[144,128]{1,0:T(1,128)}', space=vmem, size = 0x12000, scoped, tag = 'internal scratch']
  %s0 = inlined_call_operand.vmem [shape: f32[64,32], index: 0, kind: input, shape index: {}]
  %s1 = inlined_call_operand.hbm [shape: f32[32,32], index: 1, kind: input, shape index: {}]
  %s2 = inlined_call_operand.hbm [shape: f32[32,32], index: 2, kind: input, shape index: {}]
  %s3 = inlined_call_operand.hbm [shape: f32[32,32], index: 3, kind: input, shape index: {}]
  %s4 = inlined_call_operand.hbm [shape: f32[48,64], index: 4, kind: input, shape index: {}]
  %s5 = inlined_call_operand.vmem [shape: f32[1,64], index: 5, kind: input, shape index: {}]
  %s6 = inlined_call_operand.hbm [shape: f32[64,32], index: 6, kind: input, shape index: {}]
  %s7 = inlined_call_operand.vmem [shape: f32[96,32], index: 7, kind: input, shape index: {}]
  %s8 = inlined_call_operand.vmem [shape: f32[1,32], index: 8, kind: input, shape index: {}]
  %s9 = inlined_call_operand.hbm [shape: f32[32,128], index: 9, kind: input, shape index: {}]
  %s10 = inlined_call_operand.vmem [shape: f32[1,128], index: 10, kind: input, shape index: {}]
  %s11 = inlined_call_operand.hbm [shape: f32[64,16], index: 11, kind: output, shape index: {0}]
  %s12 = inlined_call_operand.hbm [shape: f32[64,128], index: 12, kind: output, shape index: {1}]
  %13 = xla_tuple %s11, %s12
  %s14 = sld [smem:[#allocation0]]
  $region109: #{_lambda_.1} parent=0
    _
  %s16 = ssub.s32 1, %s14
  %s17 = scalar_select 0, %s16, %s14
  $region1: #{_lambda_.1} parent=0
    #allocation2 [shape = 'u8[16384]{0}', space=vmem, size = 0x4000, scoped, tag = 'input window, operand 1, single buffered']
    #allocation3 [shape = 's32[2]{0}', space=sflag, size = 0x8, scoped, tag = 'scoped memory for _lambda_.1']
    #allocation4 [shape = 's32[2]{0}', space=sflag, size = 0x8, scoped, tag = 'scoped memory for _lambda_.1']
    #allocation5 [shape = 'u8[16384]{0}', space=vmem, size = 0x4000, scoped, tag = 'input window, operand 2, single buffered']
    #allocation6 [shape = 's32[1]{0}', space=sflag, size = 0x4, scoped, tag = 'scoped memory for _lambda_.1']
    #allocation7 [shape = 'u8[16384]{0}', space=vmem, size = 0x4000, scoped, tag = 'input window, operand 3, single buffered']
    #allocation8 [shape = 'u8[24576]{0}', space=vmem, size = 0x6000, scoped, tag = 'input window, operand 4, single buffered']
    #allocation9 [shape = 's32[1]{0}', space=sflag, size = 0x4, scoped, tag = 'scoped memory for _lambda_.1']
    #allocation10 [shape = 'u8[32768]{0}', space=vmem, size = 0x8000, scoped, tag = 'input window, operand 6, single buffered']
    #allocation11 [shape = 'u8[16384]{0}', space=vmem, size = 0x4000, scoped, tag = 'input window, operand 9, single buffered']
    #allocation12 [shape = 's32[1]{0}', space=sflag, size = 0x4, scoped, tag = 'scoped memory for _lambda_.1']
    #allocation13 [shape = 'u8[32768]{0}', space=vmem, size = 0x8000, scoped, tag = 'output window, operand 0']
    #allocation14 [shape = 'u8[32768]{0}', space=vmem, size = 0x8000, scoped, tag = 'output window, operand 1']
    #allocation15 [shape = 's32[2]{0}', space=sflag, size = 0x8, scoped, tag = 'scoped memory for _lambda_.1']
    %18 = vsyncpa [#allocation3], 0
    %19 = vsyncpa [#allocation6], 0
    %20 = vsyncpa [#allocation9], 0
    %21 = vsyncpa [#allocation12], 0
    %22 = vsyncpa [#allocation4], 0
    %s23 = scalar_lea.sflag [#allocation4], 1
    %24 = vsyncpa %s23, 0
    %25 = vsyncpa [#allocation15], 0
    %s26 = scalar_lea.sflag [#allocation15], 1
    %27 = vsyncpa %s26, 0
    loop: start=0, step=1, limit=4
    $region2: #{_lambda_.1} parent=1 // loop_pre_header
      _
    $region3: #{_lambda_.1} parent=1 // loop_header
      %s29 = sphi 0, %s33
      %p30 = scmp.ge.s32.totalorder %s29, 4
      %s39 = sphi 0, %s41
      %s42 = sphi 0, %s39
      %s43 = sphi 0, %s42
      %s59 = sphi 0, %s43
      %s63 = sphi 0, %s63
      %s65 = sphi 0, %s63
      %s66 = sphi 0, %s65
      %s80 = sphi 0, %s66
      %s84 = sphi 0, %s84
      %s86 = sphi 0, %s84
      %s87 = sphi 0, %s86
      %s101 = sphi 0, %s87
      %s105 = sphi 0, %s105
      %s107 = sphi 0, %s105
      %s108 = sphi 0, %s107
      %s122 = sphi 0, %s108
      %s126 = sphi 0, %s126
      %s128 = sphi 0, %s126
      %s129 = sphi 0, %s128
      %s143 = sphi 0, %s129
      %s147 = sphi 0, %s147
      %s149 = sphi 0, %s147
      %s150 = sphi 0, %s149
      %s164 = sphi 0, %s150
      %s168 = sphi 0, %s168
      %s170 = sphi 0, %s168
      %s171 = sphi 0, %s170
      %s185 = sphi 0, %s171
      %s189 = sphi 0, %s189
      %s191 = sphi 0, %s189
      %s192 = sphi 0, %s191
      %s206 = sphi 0, %s192
      %s210 = sphi 0, %s210
      %s212 = sphi 0, %s210
      %s213 = sphi 0, %s212
      %s227 = sphi 0, %s213
      %s231 = sphi 0, %s231
      %s233 = sphi 0, %s231
      %s234 = sphi 0, %s233
      %s248 = sphi 0, %s234
      %s252 = sphi 0, %s252
      %s254 = sphi 0, %s252
      %s255 = sphi 0, %s254
      %s269 = sphi 0, %s255
      %s275 = sphi 0, %s277
      %s278 = sphi 0, %s275
      %s279 = sphi 0, %s278
      %s295 = sphi 0, %s279
      %s301 = sphi 0, %s303
      %s304 = sphi 0, %s301
      %s305 = sphi 0, %s304
      %s321 = sphi 0, %s305
    $region4: #{_lambda_.1} parent=1 // loop_header_branch
      %32 = sbr.rel (%p30) target = $region8
    $region5: #{_lambda_.1} parent=1 // loop_body
      %s34 = ssub.s32 %s29, 1
      %s35 = ssub.s32 %s29, 2
      %s36 = sadd.s32 %s29, 1
      %s37 = ssub.s32 %s29, %s36
      %p38 = scmp.eq.s32.totalorder %s37, 0
      %s40 = sadd.s32 %s39, 1
      %s41 = scalar_select %p38, %s39, %s40
      %p44 = pneg %p38
      %p45 = scmp.eq.s32.totalorder %s29, 1
      %p46 = por %p44, %p45
      %p47 = scmp.ne.s32.totalorder %s39, %s42
      %p48 = scmp.eq.s32.totalorder %s29, 0
      %p49 = por %p47, %p48
      %p50 = scmp.ne.s32.totalorder %s39, %s42
      %p51 = scmp.eq.s32.totalorder %s34, 1
      %p52 = por %p50, %p51
      %p53 = scmp.ne.s32.totalorder %s42, %s43
      %p54 = scmp.eq.s32.totalorder %s34, 0
      %p55 = por %p53, %p54
      %p56 = scmp.ne.s32.totalorder %s42, %s43
      %p57 = scmp.eq.s32.totalorder %s35, 1
      %p58 = por %p56, %p57
      %p60 = scmp.ne.s32.totalorder %s43, %s59
      %p61 = scmp.eq.s32.totalorder %s35, 0
      %p62 = por %p60, %p61
      %s64 = sadd.s32 %s63, 1
      %p67 = scmp.eq.s32.totalorder %s29, 1
      %p68 = scmp.ne.s32.totalorder %s63, %s65
      %p69 = scmp.eq.s32.totalorder %s29, 0
      %p70 = por %p68, %p69
      %p71 = scmp.ne.s32.totalorder %s63, %s65
      %p72 = scmp.eq.s32.totalorder %s34, 1
      %p73 = por %p71, %p72
      %p74 = scmp.ne.s32.totalorder %s65, %s66
      %p75 = scmp.eq.s32.totalorder %s34, 0
      %p76 = por %p74, %p75
      %p77 = scmp.ne.s32.totalorder %s65, %s66
      %p78 = scmp.eq.s32.totalorder %s35, 1
      %p79 = por %p77, %p78
      %p81 = scmp.ne.s32.totalorder %s66, %s80
      %p82 = scmp.eq.s32.totalorder %s35, 0
      %p83 = por %p81, %p82
      %s85 = sadd.s32 %s84, 1
      %p88 = scmp.eq.s32.totalorder %s29, 1
      %p89 = scmp.ne.s32.totalorder %s84, %s86
      %p90 = scmp.eq.s32.totalorder %s29, 0
      %p91 = por %p89, %p90
      %p92 = scmp.ne.s32.totalorder %s84, %s86
      %p93 = scmp.eq.s32.totalorder %s34, 1
      %p94 = por %p92, %p93
      %p95 = scmp.ne.s32.totalorder %s86, %s87
      %p96 = scmp.eq.s32.totalorder %s34, 0
      %p97 = por %p95, %p96
      %p98 = scmp.ne.s32.totalorder %s86, %s87
      %p99 = scmp.eq.s32.totalorder %s35, 1
      %p100 = por %p98, %p99
      %p102 = scmp.ne.s32.totalorder %s87, %s101
      %p103 = scmp.eq.s32.totalorder %s35, 0
      %p104 = por %p102, %p103
      %s106 = sadd.s32 %s105, 1
      %p109 = scmp.eq.s32.totalorder %s29, 1
      %p110 = scmp.ne.s32.totalorder %s105, %s107
      %p111 = scmp.eq.s32.totalorder %s29, 0
      %p112 = por %p110, %p111
      %p113 = scmp.ne.s32.totalorder %s105, %s107
      %p114 = scmp.eq.s32.totalorder %s34, 1
      %p115 = por %p113, %p114
      %p116 = scmp.ne.s32.totalorder %s107, %s108
      %p117 = scmp.eq.s32.totalorder %s34, 0
      %p118 = por %p116, %p117
      %p119 = scmp.ne.s32.totalorder %s107, %s108
      %p120 = scmp.eq.s32.totalorder %s35, 1
      %p121 = por %p119, %p120
      %p123 = scmp.ne.s32.totalorder %s108, %s122
      %p124 = scmp.eq.s32.totalorder %s35, 0
      %p125 = por %p123, %p124
      %s127 = sadd.s32 %s126, 1
      %p130 = scmp.eq.s32.totalorder %s29, 1
      %p131 = scmp.ne.s32.totalorder %s126, %s128
      %p132 = scmp.eq.s32.totalorder %s29, 0
      %p133 = por %p131, %p132
      %p134 = scmp.ne.s32.totalorder %s126, %s128
      %p135 = scmp.eq.s32.totalorder %s34, 1
      %p136 = por %p134, %p135
      %p137 = scmp.ne.s32.totalorder %s128, %s129
      %p138 = scmp.eq.s32.totalorder %s34, 0
      %p139 = por %p137, %p138
      %p140 = scmp.ne.s32.totalorder %s128, %s129
      %p141 = scmp.eq.s32.totalorder %s35, 1
      %p142 = por %p140, %p141
      %p144 = scmp.ne.s32.totalorder %s129, %s143
      %p145 = scmp.eq.s32.totalorder %s35, 0
      %p146 = por %p144, %p145
      %s148 = sadd.s32 %s147, 1
      %p151 = scmp.eq.s32.totalorder %s29, 1
      %p152 = scmp.ne.s32.totalorder %s147, %s149
      %p153 = scmp.eq.s32.totalorder %s29, 0
      %p154 = por %p152, %p153
      %p155 = scmp.ne.s32.totalorder %s147, %s149
      %p156 = scmp.eq.s32.totalorder %s34, 1
      %p157 = por %p155, %p156
      %p158 = scmp.ne.s32.totalorder %s149, %s150
      %p159 = scmp.eq.s32.totalorder %s34, 0
      %p160 = por %p158, %p159
      %p161 = scmp.ne.s32.totalorder %s149, %s150
      %p162 = scmp.eq.s32.totalorder %s35, 1
      %p163 = por %p161, %p162
      %p165 = scmp.ne.s32.totalorder %s150, %s164
      %p166 = scmp.eq.s32.totalorder %s35, 0
      %p167 = por %p165, %p166
      %s169 = sadd.s32 %s168, 1
      %p172 = scmp.eq.s32.totalorder %s29, 1
      %p173 = scmp.ne.s32.totalorder %s168, %s170
      %p174 = scmp.eq.s32.totalorder %s29, 0
      %p175 = por %p173, %p174
      %p176 = scmp.ne.s32.totalorder %s168, %s170
      %p177 = scmp.eq.s32.totalorder %s34, 1
      %p178 = por %p176, %p177
      %p179 = scmp.ne.s32.totalorder %s170, %s171
      %p180 = scmp.eq.s32.totalorder %s34, 0
      %p181 = por %p179, %p180
      %p182 = scmp.ne.s32.totalorder %s170, %s171
      %p183 = scmp.eq.s32.totalorder %s35, 1
      %p184 = por %p182, %p183
      %p186 = scmp.ne.s32.totalorder %s171, %s185
      %p187 = scmp.eq.s32.totalorder %s35, 0
      %p188 = por %p186, %p187
      %s190 = sadd.s32 %s189, 1
      %p193 = scmp.eq.s32.totalorder %s29, 1
      %p194 = scmp.ne.s32.totalorder %s189, %s191
      %p195 = scmp.eq.s32.totalorder %s29, 0
      %p196 = por %p194, %p195
      %p197 = scmp.ne.s32.totalorder %s189, %s191
      %p198 = scmp.eq.s32.totalorder %s34, 1
      %p199 = por %p197, %p198
      %p200 = scmp.ne.s32.totalorder %s191, %s192
      %p201 = scmp.eq.s32.totalorder %s34, 0
      %p202 = por %p200, %p201
      %p203 = scmp.ne.s32.totalorder %s191, %s192
      %p204 = scmp.eq.s32.totalorder %s35, 1
      %p205 = por %p203, %p204
      %p207 = scmp.ne.s32.totalorder %s192, %s206
      %p208 = scmp.eq.s32.totalorder %s35, 0
      %p209 = por %p207, %p208
      %s211 = sadd.s32 %s210, 1
      %p214 = scmp.eq.s32.totalorder %s29, 1
      %p215 = scmp.ne.s32.totalorder %s210, %s212
      %p216 = scmp.eq.s32.totalorder %s29, 0
      %p217 = por %p215, %p216
      %p218 = scmp.ne.s32.totalorder %s210, %s212
      %p219 = scmp.eq.s32.totalorder %s34, 1
      %p220 = por %p218, %p219
      %p221 = scmp.ne.s32.totalorder %s212, %s213
      %p222 = scmp.eq.s32.totalorder %s34, 0
      %p223 = por %p221, %p222
      %p224 = scmp.ne.s32.totalorder %s212, %s213
      %p225 = scmp.eq.s32.totalorder %s35, 1
      %p226 = por %p224, %p225
      %p228 = scmp.ne.s32.totalorder %s213, %s227
      %p229 = scmp.eq.s32.totalorder %s35, 0
      %p230 = por %p228, %p229
      %s232 = sadd.s32 %s231, 1
      %p235 = scmp.eq.s32.totalorder %s29, 1
      %p236 = scmp.ne.s32.totalorder %s231, %s233
      %p237 = scmp.eq.s32.totalorder %s29, 0
      %p238 = por %p236, %p237
      %p239 = scmp.ne.s32.totalorder %s231, %s233
      %p240 = scmp.eq.s32.totalorder %s34, 1
      %p241 = por %p239, %p240
      %p242 = scmp.ne.s32.totalorder %s233, %s234
      %p243 = scmp.eq.s32.totalorder %s34, 0
      %p244 = por %p242, %p243
      %p245 = scmp.ne.s32.totalorder %s233, %s234
      %p246 = scmp.eq.s32.totalorder %s35, 1
      %p247 = por %p245, %p246
      %p249 = scmp.ne.s32.totalorder %s234, %s248
      %p250 = scmp.eq.s32.totalorder %s35, 0
      %p251 = por %p249, %p250
      %s253 = sadd.s32 %s252, 1
      %p256 = scmp.eq.s32.totalorder %s29, 1
      %p257 = scmp.ne.s32.totalorder %s252, %s254
      %p258 = scmp.eq.s32.totalorder %s29, 0
      %p259 = por %p257, %p258
      %p260 = scmp.ne.s32.totalorder %s252, %s254
      %p261 = scmp.eq.s32.totalorder %s34, 1
      %p262 = por %p260, %p261
      %p263 = scmp.ne.s32.totalorder %s254, %s255
      %p264 = scmp.eq.s32.totalorder %s34, 0
      %p265 = por %p263, %p264
      %p266 = scmp.ne.s32.totalorder %s254, %s255
      %p267 = scmp.eq.s32.totalorder %s35, 1
      %p268 = por %p266, %p267
      %p270 = scmp.ne.s32.totalorder %s255, %s269
      %p271 = scmp.eq.s32.totalorder %s35, 0
      %p272 = por %p270, %p271
      %s273 = ssub.s32 %s29, %s36
      %p274 = scmp.eq.s32.totalorder %s273, 0
      %s276 = sadd.s32 %s275, 1
      %s277 = scalar_select %p274, %s275, %s276
      %p280 = pneg %p274
      %p281 = scmp.eq.s32.totalorder %s29, 1
      %p282 = por %p280, %p281
      %p283 = scmp.ne.s32.totalorder %s275, %s278
      %p284 = scmp.eq.s32.totalorder %s29, 0
      %p285 = por %p283, %p284
      %p286 = scmp.ne.s32.totalorder %s275, %s278
      %p287 = scmp.eq.s32.totalorder %s34, 1
      %p288 = por %p286, %p287
      %p289 = scmp.ne.s32.totalorder %s278, %s279
      %p290 = scmp.eq.s32.totalorder %s34, 0
      %p291 = por %p289, %p290
      %p292 = scmp.ne.s32.totalorder %s278, %s279
      %p293 = scmp.eq.s32.totalorder %s35, 1
      %p294 = por %p292, %p293
      %p296 = scmp.ne.s32.totalorder %s279, %s295
      %p297 = scmp.eq.s32.totalorder %s35, 0
      %p298 = por %p296, %p297
      %s299 = ssub.s32 %s29, %s36
      %p300 = scmp.eq.s32.totalorder %s299, 0
      %s302 = sadd.s32 %s301, 1
      %s303 = scalar_select %p300, %s301, %s302
      %p306 = pneg %p300
      %p307 = scmp.eq.s32.totalorder %s29, 1
      %p308 = por %p306, %p307
      %p309 = scmp.ne.s32.totalorder %s301, %s304
      %p310 = scmp.eq.s32.totalorder %s29, 0
      %p311 = por %p309, %p310
      %p312 = scmp.ne.s32.totalorder %s301, %s304
      %p313 = scmp.eq.s32.totalorder %s34, 1
      %p314 = por %p312, %p313
      %p315 = scmp.ne.s32.totalorder %s304, %s305
      %p316 = scmp.eq.s32.totalorder %s34, 0
      %p317 = por %p315, %p316
      %p318 = scmp.ne.s32.totalorder %s304, %s305
      %p319 = scmp.eq.s32.totalorder %s35, 1
      %p320 = por %p318, %p319
      %p322 = scmp.ne.s32.totalorder %s305, %s321
      %p323 = scmp.eq.s32.totalorder %s35, 0
      %p324 = por %p322, %p323
      %p325 = scmp.le.s32.totalorder 1, %s29
      %p326 = scmp.lt.s32.totalorder %s29, 3
      %p327 = pnand %p325, %p326
      %p328 = pneg %p327
      // Predicated region
      $region9: #{_lambda_.1} parent=5 // pred_check
        _
      $region10: #{_lambda_.1} parent=5 // pred_check_branch
        %330 = sbr.rel (%p327) target = $region12
      $region11: #{_lambda_.1} parent=5 // pred_region
        %s331 = ssub.s32 %s29, 1
        // Predicated region
        $region13: #{_lambda_.1} parent=11 // pred_check
          %p332 = pneg %p76
        $region14: #{_lambda_.1} parent=11 // pred_check_branch
          %334 = sbr.rel (%p332) target = $region16
        $region15: #{_lambda_.1} parent=11 // pred_region
          %s336 = ssub.s32 512, 512
          %337 = vsyncadd [#allocation3], %s336
          %s338 = sshll.u32 [#allocation2], 4
          %s339 = int_to_ptr.vmem [resolvable:$true] %s338
          %344 = dma.hbm_to_vmem [thread:$0]  %s1, 512, %s339, [#allocation3], 128, 128, 8
        $region16: #{_lambda_.1} parent=11 // pred_fallthru
          _
        // Predicated region
        $region17: #{_lambda_.1} parent=11 // pred_check
          %p345 = pneg %p97
        $region18: #{_lambda_.1} parent=11 // pred_check_branch
          %347 = sbr.rel (%p345) target = $region20
        $region19: #{_lambda_.1} parent=11 // pred_region
          %s349 = ssub.s32 512, 512
          %350 = vsyncadd [#allocation6], %s349
          %s351 = sshll.u32 [#allocation5], 4
          %s352 = int_to_ptr.vmem [resolvable:$true] %s351
          %357 = dma.hbm_to_vmem [thread:$0]  %s2, 512, %s352, [#allocation6], 128, 128, 8
        $region20: #{_lambda_.1} parent=11 // pred_fallthru
          _
        // Predicated region
        $region21: #{_lambda_.1} parent=11 // pred_check
          %p358 = pneg %p118
        $region22: #{_lambda_.1} parent=11 // pred_check_branch
          %360 = sbr.rel (%p358) target = $region24
        $region23: #{_lambda_.1} parent=11 // pred_region
          %s362 = ssub.s32 512, 512
          %363 = vsyncadd [#allocation6], %s362
          %s364 = sshll.u32 [#allocation7], 4
          %s365 = int_to_ptr.vmem [resolvable:$true] %s364
          %370 = dma.hbm_to_vmem [thread:$0]  %s3, 512, %s365, [#allocation6], 128, 128, 8
        $region24: #{_lambda_.1} parent=11 // pred_fallthru
          _
        // Predicated region
        $region25: #{_lambda_.1} parent=11 // pred_check
          %p371 = pneg %p139
        $region26: #{_lambda_.1} parent=11 // pred_check_branch
          %373 = sbr.rel (%p371) target = $region28
        $region27: #{_lambda_.1} parent=11 // pred_region
          %s375 = ssub.s32 768, 768
          %376 = vsyncadd [#allocation9], %s375
          %s377 = sshll.u32 [#allocation8], 4
          %s378 = int_to_ptr.vmem [resolvable:$true] %s377
          %383 = dma.hbm_to_vmem [thread:$0]  %s4, 768, %s378, [#allocation9], 128, 128, 8
        $region28: #{_lambda_.1} parent=11 // pred_fallthru
          _
        // Predicated region
        $region29: #{_lambda_.1} parent=11 // pred_check
          %p384 = pneg %p160
        $region30: #{_lambda_.1} parent=11 // pred_check_branch
          %386 = sbr.rel (%p384) target = $region32
        $region31: #{_lambda_.1} parent=11 // pred_region
          _
        $region32: #{_lambda_.1} parent=11 // pred_fallthru
          _
        // Predicated region
        $region33: #{_lambda_.1} parent=11 // pred_check
          %p387 = pneg %p181
        $region34: #{_lambda_.1} parent=11 // pred_check_branch
          %389 = sbr.rel (%p387) target = $region36
        $region35: #{_lambda_.1} parent=11 // pred_region
          %s391 = ssub.s32 1024, 1024
          %392 = vsyncadd [#allocation9], %s391
          %s393 = sshll.u32 [#allocation10], 4
          %s394 = int_to_ptr.vmem [resolvable:$true] %s393
          %399 = dma.hbm_to_vmem [thread:$0]  %s6, 1024, %s394, [#allocation9], 128, 128, 8
        $region36: #{_lambda_.1} parent=11 // pred_fallthru
          _
        // Predicated region
        $region37: #{_lambda_.1} parent=11 // pred_check
          %p400 = pneg %p202
        $region38: #{_lambda_.1} parent=11 // pred_check_branch
          %402 = sbr.rel (%p400) target = $region40
        $region39: #{_lambda_.1} parent=11 // pred_region
          _
        $region40: #{_lambda_.1} parent=11 // pred_fallthru
          _
        // Predicated region
        $region41: #{_lambda_.1} parent=11 // pred_check
          %p403 = pneg %p223
        $region42: #{_lambda_.1} parent=11 // pred_check_branch
          %405 = sbr.rel (%p403) target = $region44
        $region43: #{_lambda_.1} parent=11 // pred_region
          _
        $region44: #{_lambda_.1} parent=11 // pred_fallthru
          _
        // Predicated region
        $region45: #{_lambda_.1} parent=11 // pred_check
          %p406 = pneg %p244
        $region46: #{_lambda_.1} parent=11 // pred_check_branch
          %408 = sbr.rel (%p406) target = $region48
        $region47: #{_lambda_.1} parent=11 // pred_region
          %s410 = ssub.s32 512, 512
          %411 = vsyncadd [#allocation12], %s410
          %s412 = sshll.u32 [#allocation11], 4
          %s413 = int_to_ptr.vmem [resolvable:$true] %s412
          %418 = dma.hbm_to_vmem [thread:$0]  %s9, 512, %s413, [#allocation12], 128, 128, 8
        $region48: #{_lambda_.1} parent=11 // pred_fallthru
          _
        // Predicated region
        $region49: #{_lambda_.1} parent=11 // pred_check
          %p419 = pneg %p265
        $region50: #{_lambda_.1} parent=11 // pred_check_branch
          %421 = sbr.rel (%p419) target = $region52
        $region51: #{_lambda_.1} parent=11 // pred_region
          _
        $region52: #{_lambda_.1} parent=11 // pred_fallthru
          _
      $region12: #{_lambda_.1} parent=5 // pred_fallthru
        _
      %p422 = scmp.lt.s32.totalorder %s29, 2
      // Predicated region
      $region53: #{_lambda_.1} parent=5 // pred_check
        %p423 = pneg %p422
      $region54: #{_lambda_.1} parent=5 // pred_check_branch
        %425 = sbr.rel (%p423) target = $region56
      $region55: #{_lambda_.1} parent=5 // pred_region
        // Predicated region
        $region57: #{_lambda_.1} parent=55 // pred_check
          %p426 = pneg %p49
        $region58: #{_lambda_.1} parent=55 // pred_check_branch
          %428 = sbr.rel (%p426) target = $region60
        $region59: #{_lambda_.1} parent=55 // pred_region
          %s429 = smul.u32 4, %s29
          %p430 = scmp.lt.s32.totalorder %s429, 7
          %s431 = scalar_select %p430, %s429, 7
          %s432 = smul.addr %s431, 8
          %s433 = scalar_lea.vmem %s0, %s432
          %s434 = smul.u32 4, %s29
        $region60: #{_lambda_.1} parent=55 // pred_fallthru
          _
      $region56: #{_lambda_.1} parent=5 // pred_fallthru
        _
      %p435 = scmp.le.s32.totalorder 1, %s29
      %p436 = scmp.lt.s32.totalorder %s29, 3
      %p437 = pnand %p435, %p436
      %p438 = pneg %p437
      // Predicated region
      $region61: #{_lambda_.1} parent=5 // pred_check
        _
      $region62: #{_lambda_.1} parent=5 // pred_check_branch
        %440 = sbr.rel (%p437) target = $region64
      $region63: #{_lambda_.1} parent=5 // pred_region
        %s441 = ssub.s32 %s29, 1
        // Predicated region
        $region65: #{_lambda_.1} parent=63 // pred_check
          %p442 = pneg %p76
        $region66: #{_lambda_.1} parent=63 // pred_check_branch
          %444 = sbr.rel (%p442) target = $region68
        $region67: #{_lambda_.1} parent=63 // pred_region
          %445 = dma.done [#allocation3], 512
        $region68: #{_lambda_.1} parent=63 // pred_fallthru
          _
        // Predicated region
        $region69: #{_lambda_.1} parent=63 // pred_check
          %p446 = pneg %p97
        $region70: #{_lambda_.1} parent=63 // pred_check_branch
          %448 = sbr.rel (%p446) target = $region72
        $region71: #{_lambda_.1} parent=63 // pred_region
          %449 = dma.done [#allocation6], 512
        $region72: #{_lambda_.1} parent=63 // pred_fallthru
          _
        // Predicated region
        $region73: #{_lambda_.1} parent=63 // pred_check
          %p450 = pneg %p118
        $region74: #{_lambda_.1} parent=63 // pred_check_branch
          %452 = sbr.rel (%p450) target = $region76
        $region75: #{_lambda_.1} parent=63 // pred_region
          %453 = dma.done [#allocation6], 512
        $region76: #{_lambda_.1} parent=63 // pred_fallthru
          _
        // Predicated region
        $region77: #{_lambda_.1} parent=63 // pred_check
          %p454 = pneg %p139
        $region78: #{_lambda_.1} parent=63 // pred_check_branch
          %456 = sbr.rel (%p454) target = $region80
        $region79: #{_lambda_.1} parent=63 // pred_region
          %457 = dma.done [#allocation9], 768
        $region80: #{_lambda_.1} parent=63 // pred_fallthru
          _
        // Predicated region
        $region81: #{_lambda_.1} parent=63 // pred_check
          %p458 = pneg %p181
        $region82: #{_lambda_.1} parent=63 // pred_check_branch
          %460 = sbr.rel (%p458) target = $region84
        $region83: #{_lambda_.1} parent=63 // pred_region
          %461 = dma.done [#allocation9], 1024
        $region84: #{_lambda_.1} parent=63 // pred_fallthru
          _
        // Predicated region
        $region85: #{_lambda_.1} parent=63 // pred_check
          %p462 = pneg %p244
        $region86: #{_lambda_.1} parent=63 // pred_check_branch
          %464 = sbr.rel (%p462) target = $region88
        $region87: #{_lambda_.1} parent=63 // pred_region
          %465 = dma.done [#allocation12], 512
        $region88: #{_lambda_.1} parent=63 // pred_fallthru
          _
        %s466 = smul.u32 4, %s34
        %p467 = scmp.lt.s32.totalorder %s466, 7
        %s468 = scalar_select %p467, %s466, 7
        %s469 = smul.addr %s468, 8
        %s470 = scalar_lea.vmem %s0, %s469
        %p471 = pneg %p55
        %p472 = pneg %p52
        %p473 = pneg %p76
        %p474 = pneg %p73
        %p475 = pneg %p97
        %p476 = pneg %p94
        %p477 = pneg %p118
        %p478 = pneg %p115
        %p479 = pneg %p139
        %p480 = pneg %p136
        %p481 = pneg %p160
        %p482 = pneg %p157
        %p483 = pneg %p181
        %p484 = pneg %p178
        %p485 = pneg %p202
        %p486 = pneg %p199
        %p487 = pneg %p223
        %p488 = pneg %p220
        %p489 = pneg %p244
        %p490 = pneg %p241
        %p491 = pneg %p265
        %p492 = pneg %p262
        %p493 = pneg %p291
        %p494 = pneg %p288
        %s495 = sand.u32 %s278, 1
        %s496 = scalar_lea.sflag [#allocation4], %s495
        %s497 = sand.u32 %s278, 1
        %s498 = smul.addr %s497, 32
        %s499 = scalar_lea.vmem [#allocation13], %s498
        %p500 = pneg %p317
        %p501 = pneg %p314
        %s502 = sand.u32 %s304, 1
        %s503 = scalar_lea.sflag [#allocation15], %s502
        %s504 = sand.u32 %s304, 1
        %s505 = smul.addr %s504, 32
        %s506 = scalar_lea.vmem [#allocation14], %s505
        %s507 = smul.u32 4, %s34
        %p508 = scmp.lt.s32.totalorder %s507, 7
        %s509 = scalar_select %p508, %s507, 7
        %s510 = smul.addr %s509, 8
        %s511 = scalar_lea.vmem %s0, %s510
        %s512 = smul.u32 4, %s34
        %s513 = smul.u32 4, %s34
        %s514 = smul.u32 4, %s34
        %v515 = vld [vmem:[%s511] sm:$0xff]
        %v516 = vld [vmem:[%s511 + $0x8] sm:$0xff]
        %v517 = vld [vmem:[%s511 + $0x10] sm:$0xff]
        %v518 = vld [vmem:[%s511 + $0x18] sm:$0xff]
        %v519 = vld [vmem:[#allocation2] sm:$0xff]
        %v520 = vld [vmem:[#allocation2 + $0x8] sm:$0xff]
        %v521 = vld [vmem:[#allocation2 + $0x10] sm:$0xff]
        %v522 = vld [vmem:[#allocation2 + $0x18] sm:$0xff]
        %vm523 = vcmask 261120
        %v525 = vsel %vm523, %v515, 0
        %v528 = vsel %vm523, %v516, 0
        %v531 = vsel %vm523, %v517, 0
        %v534 = vsel %vm523, %v518, 0
        %536 = vmatprep.subr.mxu0 0.0
        %537 = vmatpush1.msra.mxu0 %v519
        %538 = vmatprep.subr.mxu0 0.0
        %539 = vmatpush1.msra.mxu0 %v520
        %540 = vmatprep.subr.mxu0 0.0
        %541 = vmatpush1.msra.mxu0 %v521
        %542 = vmatprep.subr.mxu0 0.0
        %543 = vmatpush1.msra.mxu0 %v522
        %544 = vmatprep.subr.mxu0 0.0
        %545 = vmatpush1.msra.mxu0 0.0
        %546 = vmatprep.subr.mxu0 0.0
        %547 = vmatpush1.msra.mxu0 0.0
        %548 = vmatprep.subr.mxu0 0.0
        %549 = vmatpush1.msra.mxu0 0.0
        %550 = vmatprep.subr.mxu0 0.0
        %551 = vmatpush1.msra.mxu0 0.0
        %552 = vmatprep.subr.mxu0 0.0
        %553 = vmatpush1.msra.mxu0 0.0
        %554 = vmatprep.subr.mxu0 0.0
        %555 = vmatpush1.msra.mxu0 0.0
        %556 = vmatprep.subr.mxu0 0.0
        %557 = vmatpush1.msra.mxu0 0.0
        %558 = vmatprep.subr.mxu0 0.0
        %559 = vmatpush1.msra.mxu0 0.0
        %560 = vmatprep.subr.mxu0 0.0
        %561 = vmatpush1.msra.mxu0 0.0
        %562 = vmatprep.subr.mxu0 0.0
        %563 = vmatpush1.msra.mxu0 0.0
        %564 = vmatprep.subr.mxu0 0.0
        %565 = vmatpush1.msra.mxu0 0.0
        %566 = vmatprep.subr.mxu0 0.0
        %567 = vmatpush1.msra.mxu0 0.0
        %568 = vmatprep.subr.mxu0 0.0
        %569 = vmatpush1.msra.mxu0 0.0
        %570 = vmatprep.subr.mxu0 0.0
        %571 = vmatpush1.msra.mxu0 0.0
        %572 = vmatprep.subr.mxu0 0.0
        %573 = vmatpush1.msra.mxu0 0.0
        %574 = vmatprep.subr.mxu0 0.0
        %575 = vmatpush1.msra.mxu0 0.0
        %576 = vmatprep.subr.mxu0 0.0
        %577 = vmatpush1.msra.mxu0 0.0
        %578 = vmatprep.subr.mxu0 0.0
        %579 = vmatpush1.msra.mxu0 0.0
        %580 = vmatprep.subr.mxu0 0.0
        %581 = vmatpush1.msra.mxu0 0.0
        %582 = vmatprep.subr.mxu0 0.0
        %583 = vmatpush1.msra.mxu0 0.0
        %584 = vmatprep.subr.mxu0 0.0
        %585 = vmatpush1.msra.mxu0 0.0
        %586 = vmatprep.subr.mxu0 0.0
        %587 = vmatpush1.msra.mxu0 0.0
        %588 = vmatprep.subr.mxu0 0.0
        %589 = vmatpush1.msra.mxu0 0.0
        %590 = vmatprep.subr.mxu0 0.0
        %591 = vmatpush1.msra.mxu0 0.0
        %592 = vmatprep.subr.mxu0 0.0
        %593 = vmatpush1.msra.mxu0 0.0
        %594 = vmatprep.subr.mxu0 0.0
        %595 = vmatpush1.msra.mxu0 0.0
        %596 = vmatprep.subr.mxu0 0.0
        %597 = vmatpush1.msra.mxu0 0.0
        %598 = vmatprep.subr.mxu0 0.0
        %599 = vmatpush1.msra.mxu0 0.0
        %600 = vmatprep.mubr.f32.mxu0 0.0
        %601 = vmatmul.mubr.f32.gmra.mrb[0].mxu0 %v525
        %v602 = vpop.f32.mrb[0].mxu0
        %v603 = vadd.f32 0.0, %v602
        %v604 = vpop.f32.mrb[0].mxu0
        %605 = vmatprep.mubr.f32.mxu0 0.0
        %606 = vmatmul.mubr.f32.gmra.mrb[0].mxu0 %v528
        %v607 = vpop.f32.mrb[0].mxu0
        %v608 = vadd.f32 0.0, %v607
        %v609 = vpop.f32.mrb[0].mxu0
        %610 = vmatprep.mubr.f32.mxu0 0.0
        %611 = vmatmul.mubr.f32.gmra.mrb[0].mxu0 %v531
        %v612 = vpop.f32.mrb[0].mxu0
        %v613 = vadd.f32 0.0, %v612
        %v614 = vpop.f32.mrb[0].mxu0
        %615 = vmatprep.mubr.f32.mxu0 0.0
        %616 = vmatmul.mubr.f32.gmra.mrb[0].mxu0 %v534
        %v617 = vpop.f32.mrb[0].mxu0
        %v618 = vadd.f32 0.0, %v617
        %v619 = vpop.f32.mrb[0].mxu0
        %620 = vdwg.mxu0
        %v621 = vmul.f32 %v603, %v603
        %v622 = vmul.f32 %v608, %v608
        %v623 = vmul.f32 %v613, %v613
        %v624 = vmul.f32 %v618, %v618
        %629 = vrot.lane.b32.xlu0 %v621, 112
        %v630 = vpop.permute.xlu0 %629
        %631 = vrot.lane.b32.xlu0 %v622, 112
        %v632 = vpop.permute.xlu0 %631
        %633 = vrot.lane.b32.xlu0 %v623, 112
        %v634 = vpop.permute.xlu0 %633
        %635 = vrot.lane.b32.xlu0 %v624, 112
        %v636 = vpop.permute.xlu0 %635
        %v641 = vadd.f32 %v621, %v630
        %v642 = vadd.f32 %v622, %v632
        %v643 = vadd.f32 %v623, %v634
        %v644 = vadd.f32 %v624, %v636
        %v645 = vadd.f32 %v641, 1e-08
        %v646 = vadd.f32 %v642, 1e-08
        %v647 = vadd.f32 %v643, 1e-08
        %v648 = vadd.f32 %v644, 1e-08
        %v649 = vlog2.pop %v645
        %v650 = vmul.f32 %v649, 0.6931472
        %v651 = vlog2.pop %v646
        %v652 = vmul.f32 %v651, 0.6931472
        %v653 = vlog2.pop %v647
        %v654 = vmul.f32 %v653, 0.6931472
        %v655 = vlog2.pop %v648
        %v656 = vmul.f32 %v655, 0.6931472
        %vm657 = vcmask 130048
        %v658 = vsel %vm657, %v650, -inf
        %659 = vmax.xlane.f32.xlu0 %v658
        %v660 = vpop.xlane.xlu0 %659
        %v661 = vsel %vm657, %v652, -inf
        %662 = vmax.xlane.f32.xlu0 %v661
        %v663 = vpop.xlane.xlu0 %662
        %v664 = vsel %vm657, %v654, -inf
        %665 = vmax.xlane.f32.xlu0 %v664
        %v666 = vpop.xlane.xlu0 %665
        %v667 = vsel %vm657, %v656, -inf
        %668 = vmax.xlane.f32.xlu0 %v667
        %v669 = vpop.xlane.xlu0 %668
        %v670 = vrot.slane %v660, 4
        %v671 = vmax.f32 %v660, %v670
        %v672 = vrot.slane %v671, 2
        %v673 = vmax.f32 %v671, %v672
        %v674 = vrot.slane %v673, 1
        %v675 = vmax.f32 %v673, %v674
        %v676 = vrot.slane %v663, 4
        %v677 = vmax.f32 %v663, %v676
        %v678 = vrot.slane %v677, 2
        %v679 = vmax.f32 %v677, %v678
        %v680 = vrot.slane %v679, 1
        %v681 = vmax.f32 %v679, %v680
        %v682 = vrot.slane %v666, 4
        %v683 = vmax.f32 %v666, %v682
        %v684 = vrot.slane %v683, 2
        %v685 = vmax.f32 %v683, %v684
        %v686 = vrot.slane %v685, 1
        %v687 = vmax.f32 %v685, %v686
        %v688 = vrot.slane %v669, 4
        %v689 = vmax.f32 %v669, %v688
        %v690 = vrot.slane %v689, 2
        %v691 = vmax.f32 %v689, %v690
        %v692 = vrot.slane %v691, 1
        %v693 = vmax.f32 %v691, %v692
        %v694 = vsel %vm657, %v650, inf
        %695 = vmin.xlane.f32.xlu0 %v694
        %v696 = vpop.xlane.xlu0 %695
        %v697 = vsel %vm657, %v652, inf
        %698 = vmin.xlane.f32.xlu0 %v697
        %v699 = vpop.xlane.xlu0 %698
        %v700 = vsel %vm657, %v654, inf
        %701 = vmin.xlane.f32.xlu0 %v700
        %v702 = vpop.xlane.xlu0 %701
        %v703 = vsel %vm657, %v656, inf
        %704 = vmin.xlane.f32.xlu0 %v703
        %v705 = vpop.xlane.xlu0 %704
        %v706 = vrot.slane %v696, 4
        %v707 = vmin.f32 %v696, %v706
        %v708 = vrot.slane %v707, 2
        %v709 = vmin.f32 %v707, %v708
        %v710 = vrot.slane %v709, 1
        %v711 = vmin.f32 %v709, %v710
        %v712 = vrot.slane %v699, 4
        %v713 = vmin.f32 %v699, %v712
        %v714 = vrot.slane %v713, 2
        %v715 = vmin.f32 %v713, %v714
        %v716 = vrot.slane %v715, 1
        %v717 = vmin.f32 %v715, %v716
        %v718 = vrot.slane %v702, 4
        %v719 = vmin.f32 %v702, %v718
        %v720 = vrot.slane %v719, 2
        %v721 = vmin.f32 %v719, %v720
        %v722 = vrot.slane %v721, 1
        %v723 = vmin.f32 %v721, %v722
        %v724 = vrot.slane %v705, 4
        %v725 = vmin.f32 %v705, %v724
        %v726 = vrot.slane %v725, 2
        %v727 = vmin.f32 %v725, %v726
        %v728 = vrot.slane %v727, 1
        %v729 = vmin.f32 %v727, %v728
        %v730 = vsub.f32 %v675, %v711
        %v731 = vsub.f32 %v681, %v717
        %v732 = vsub.f32 %v687, %v723
        %v733 = vsub.f32 %v693, %v729
        %vm734 = vcmp.eq.f32.partialorder %v730, 0.0
        %vm735 = vcmp.eq.f32.partialorder %v731, 0.0
        %vm736 = vcmp.eq.f32.partialorder %v732, 0.0
        %vm737 = vcmp.eq.f32.partialorder %v733, 0.0
        %v738 = vsel %vm734, 1.0, %v730
        %v739 = vsel %vm735, 1.0, %v731
        %v740 = vsel %vm736, 1.0, %v732
        %v741 = vsel %vm737, 1.0, %v733
        %v742 = vsub.f32 %v650, %v711
        %v743 = vsub.f32 %v652, %v717
        %v744 = vsub.f32 %v654, %v723
        %v745 = vsub.f32 %v656, %v729
        %v746 = vrcp.pop %v738
        %v747 = vmul.f32 %v742, %v746
        %v748 = vrcp.pop %v739
        %v749 = vmul.f32 %v743, %v748
        %v750 = vrcp.pop %v740
        %v751 = vmul.f32 %v744, %v750
        %v752 = vrcp.pop %v741
        %v753 = vmul.f32 %v745, %v752
        %v754 = vsel %vm734, 1, 0
        %v755 = vsel %vm735, 1, 0
        %v756 = vsel %vm736, 1, 0
        %v757 = vsel %vm737, 1, 0
        %vm758 = vcmp.eq.s32.totalorder %v754, 1
        %vm759 = vcmp.eq.s32.totalorder %v755, 1
        %vm760 = vcmp.eq.s32.totalorder %v756, 1
        %vm761 = vcmp.eq.s32.totalorder %v757, 1
        %v762 = vsel %vm758, 0.0, %v747
        %v763 = vsel %vm759, 0.0, %v749
        %v764 = vsel %vm760, 0.0, %v751
        %v765 = vsel %vm761, 0.0, %v753
        %766 = vst.msk [vmem:[%s499] sm:$0xff] %vm657, %v762
        %767 = vst.msk [vmem:[%s499 + $0x8] sm:$0xff] %vm657, %v763
        %768 = vst.msk [vmem:[%s499 + $0x10] sm:$0xff] %vm657, %v764
        %769 = vst.msk [vmem:[%s499 + $0x18] sm:$0xff] %vm657, %v765
        %v770 = vld [vmem:[#allocation5] sm:$0xff]
        %v771 = vld [vmem:[#allocation5 + $0x8] sm:$0xff]
        %v772 = vld [vmem:[#allocation5 + $0x10] sm:$0xff]
        %v773 = vld [vmem:[#allocation5 + $0x18] sm:$0xff]
        %v774 = vld [vmem:[#allocation7] sm:$0xff]
        %v775 = vld [vmem:[#allocation7 + $0x8] sm:$0xff]
        %v776 = vld [vmem:[#allocation7 + $0x10] sm:$0xff]
        %v777 = vld [vmem:[#allocation7 + $0x18] sm:$0xff]
        %v779 = vsel %vm523, %v770, 0
        %v782 = vsel %vm523, %v771, 0
        %v785 = vsel %vm523, %v772, 0
        %v788 = vsel %vm523, %v773, 0
        %790 = vmatprep.subr.mxu0 0.0
        %791 = vmatpush1.msra.mxu0 %v762
        %792 = vmatprep.subr.mxu0 0.0
        %793 = vmatpush1.msra.mxu0 %v763
        %794 = vmatprep.subr.mxu0 0.0
        %795 = vmatpush1.msra.mxu0 %v764
        %796 = vmatprep.subr.mxu0 0.0
        %797 = vmatpush1.msra.mxu0 %v765
        %798 = vmatprep.subr.mxu0 0.0
        %799 = vmatpush1.msra.mxu0 0.0
        %800 = vmatprep.subr.mxu0 0.0
        %801 = vmatpush1.msra.mxu0 0.0
        %802 = vmatprep.subr.mxu0 0.0
        %803 = vmatpush1.msra.mxu0 0.0
        %804 = vmatprep.subr.mxu0 0.0
        %805 = vmatpush1.msra.mxu0 0.0
        %806 = vmatprep.subr.mxu0 0.0
        %807 = vmatpush1.msra.mxu0 0.0
        %808 = vmatprep.subr.mxu0 0.0
        %809 = vmatpush1.msra.mxu0 0.0
        %810 = vmatprep.subr.mxu0 0.0
        %811 = vmatpush1.msra.mxu0 0.0
        %812 = vmatprep.subr.mxu0 0.0
        %813 = vmatpush1.msra.mxu0 0.0
        %814 = vmatprep.subr.mxu0 0.0
        %815 = vmatpush1.msra.mxu0 0.0
        %816 = vmatprep.subr.mxu0 0.0
        %817 = vmatpush1.msra.mxu0 0.0
        %818 = vmatprep.subr.mxu0 0.0
        %819 = vmatpush1.msra.mxu0 0.0
        %820 = vmatprep.subr.mxu0 0.0
        %821 = vmatpush1.msra.mxu0 0.0
        %822 = vmatprep.subr.mxu0 0.0
        %823 = vmatpush1.msra.mxu0 0.0
        %824 = vmatprep.subr.mxu0 0.0
        %825 = vmatpush1.msra.mxu0 0.0
        %826 = vmatprep.subr.mxu0 0.0
        %827 = vmatpush1.msra.mxu0 0.0
        %828 = vmatprep.subr.mxu0 0.0
        %829 = vmatpush1.msra.mxu0 0.0
        %830 = vmatprep.subr.mxu0 0.0
        %831 = vmatpush1.msra.mxu0 0.0
        %832 = vmatprep.subr.mxu0 0.0
        %833 = vmatpush1.msra.mxu0 0.0
        %834 = vmatprep.subr.mxu0 0.0
        %835 = vmatpush1.msra.mxu0 0.0
        %836 = vmatprep.subr.mxu0 0.0
        %837 = vmatpush1.msra.mxu0 0.0
        %838 = vmatprep.subr.mxu0 0.0
        %839 = vmatpush1.msra.mxu0 0.0
        %840 = vmatprep.subr.mxu0 0.0
        %841 = vmatpush1.msra.mxu0 0.0
        %842 = vmatprep.subr.mxu0 0.0
        %843 = vmatpush1.msra.mxu0 0.0
        %844 = vmatprep.subr.mxu0 0.0
        %845 = vmatpush1.msra.mxu0 0.0
        %846 = vmatprep.subr.mxu0 0.0
        %847 = vmatpush1.msra.mxu0 0.0
        %848 = vmatprep.subr.mxu0 0.0
        %849 = vmatpush1.msra.mxu0 0.0
        %850 = vmatprep.subr.mxu0 0.0
        %851 = vmatpush1.msra.mxu0 0.0
        %852 = vmatprep.subr.mxu0 0.0
        %853 = vmatpush1.msra.mxu0 0.0
        %854 = vmatprep.mubr.f32.mxu0 0.0
        %855 = vmatmul.mubr.f32.gmra.mrb[0].mxu0 %v779
        %v856 = vpop.f32.mrb[0].mxu0
        %v857 = vadd.f32 0.0, %v856
        %v858 = vpop.f32.mrb[0].mxu0
        %859 = vmatprep.mubr.f32.mxu0 0.0
        %860 = vmatmul.mubr.f32.gmra.mrb[0].mxu0 %v782
        %v861 = vpop.f32.mrb[0].mxu0
        %v862 = vadd.f32 0.0, %v861
        %v863 = vpop.f32.mrb[0].mxu0
        %864 = vmatprep.mubr.f32.mxu0 0.0
        %865 = vmatmul.mubr.f32.gmra.mrb[0].mxu0 %v785
        %v866 = vpop.f32.mrb[0].mxu0
        %v867 = vadd.f32 0.0, %v866
        %v868 = vpop.f32.mrb[0].mxu0
        %869 = vmatprep.mubr.f32.mxu0 0.0
        %870 = vmatmul.mubr.f32.gmra.mrb[0].mxu0 %v788
        %v871 = vpop.f32.mrb[0].mxu0
        %v872 = vadd.f32 0.0, %v871
        %v873 = vpop.f32.mrb[0].mxu0
        %874 = vdwg.mxu0
        %v876 = vsel %vm523, %v774, 0
        %v879 = vsel %vm523, %v775, 0
        %v882 = vsel %vm523, %v776, 0
        %v885 = vsel %vm523, %v777, 0
        %887 = vmatprep.subr.mxu0 0.0
        %888 = vmatpush1.msra.mxu0 %v762
        %889 = vmatprep.subr.mxu0 0.0
        %890 = vmatpush1.msra.mxu0 %v763
        %891 = vmatprep.subr.mxu0 0.0
        %892 = vmatpush1.msra.mxu0 %v764
        %893 = vmatprep.subr.mxu0 0.0
        %894 = vmatpush1.msra.mxu0 %v765
        %895 = vmatprep.subr.mxu0 0.0
        %896 = vmatpush1.msra.mxu0 0.0
        %897 = vmatprep.subr.mxu0 0.0
        %898 = vmatpush1.msra.mxu0 0.0
        %899 = vmatprep.subr.mxu0 0.0
        %900 = vmatpush1.msra.mxu0 0.0
        %901 = vmatprep.subr.mxu0 0.0
        %902 = vmatpush1.msra.mxu0 0.0
        %903 = vmatprep.subr.mxu0 0.0
        %904 = vmatpush1.msra.mxu0 0.0
        %905 = vmatprep.subr.mxu0 0.0
        %906 = vmatpush1.msra.mxu0 0.0
        %907 = vmatprep.subr.mxu0 0.0
        %908 = vmatpush1.msra.mxu0 0.0
        %909 = vmatprep.subr.mxu0 0.0
        %910 = vmatpush1.msra.mxu0 0.0
        %911 = vmatprep.subr.mxu0 0.0
        %912 = vmatpush1.msra.mxu0 0.0
        %913 = vmatprep.subr.mxu0 0.0
        %914 = vmatpush1.msra.mxu0 0.0
        %915 = vmatprep.subr.mxu0 0.0
        %916 = vmatpush1.msra.mxu0 0.0
        %917 = vmatprep.subr.mxu0 0.0
        %918 = vmatpush1.msra.mxu0 0.0
        %919 = vmatprep.subr.mxu0 0.0
        %920 = vmatpush1.msra.mxu0 0.0
        %921 = vmatprep.subr.mxu0 0.0
        %922 = vmatpush1.msra.mxu0 0.0
        %923 = vmatprep.subr.mxu0 0.0
        %924 = vmatpush1.msra.mxu0 0.0
        %925 = vmatprep.subr.mxu0 0.0
        %926 = vmatpush1.msra.mxu0 0.0
        %927 = vmatprep.subr.mxu0 0.0
        %928 = vmatpush1.msra.mxu0 0.0
        %929 = vmatprep.subr.mxu0 0.0
        %930 = vmatpush1.msra.mxu0 0.0
        %931 = vmatprep.subr.mxu0 0.0
        %932 = vmatpush1.msra.mxu0 0.0
        %933 = vmatprep.subr.mxu0 0.0
        %934 = vmatpush1.msra.mxu0 0.0
        %935 = vmatprep.subr.mxu0 0.0
        %936 = vmatpush1.msra.mxu0 0.0
        %937 = vmatprep.subr.mxu0 0.0
        %938 = vmatpush1.msra.mxu0 0.0
        %939 = vmatprep.subr.mxu0 0.0
        %940 = vmatpush1.msra.mxu0 0.0
        %941 = vmatprep.subr.mxu0 0.0
        %942 = vmatpush1.msra.mxu0 0.0
        %943 = vmatprep.subr.mxu0 0.0
        %944 = vmatpush1.msra.mxu0 0.0
        %945 = vmatprep.subr.mxu0 0.0
        %946 = vmatpush1.msra.mxu0 0.0
        %947 = vmatprep.subr.mxu0 0.0
        %948 = vmatpush1.msra.mxu0 0.0
        %949 = vmatprep.subr.mxu0 0.0
        %950 = vmatpush1.msra.mxu0 0.0
        %951 = vmatprep.mubr.f32.mxu0 0.0
        %952 = vmatmul.mubr.f32.gmra.mrb[0].mxu0 %v876
        %v953 = vpop.f32.mrb[0].mxu0
        %v954 = vadd.f32 0.0, %v953
        %v955 = vpop.f32.mrb[0].mxu0
        %956 = vmatprep.mubr.f32.mxu0 0.0
        %957 = vmatmul.mubr.f32.gmra.mrb[0].mxu0 %v879
        %v958 = vpop.f32.mrb[0].mxu0
        %v959 = vadd.f32 0.0, %v958
        %v960 = vpop.f32.mrb[0].mxu0
        %961 = vmatprep.mubr.f32.mxu0 0.0
        %962 = vmatmul.mubr.f32.gmra.mrb[0].mxu0 %v882
        %v963 = vpop.f32.mrb[0].mxu0
        %v964 = vadd.f32 0.0, %v963
        %v965 = vpop.f32.mrb[0].mxu0
        %966 = vmatprep.mubr.f32.mxu0 0.0
        %967 = vmatmul.mubr.f32.gmra.mrb[0].mxu0 %v885
        %v968 = vpop.f32.mrb[0].mxu0
        %v969 = vadd.f32 0.0, %v968
        %v970 = vpop.f32.mrb[0].mxu0
        %971 = vdwg.mxu0
        %976 = vrot.lane.b32.xlu0 %v762, 16
        %v977 = vpop.permute.xlu0 %976
        %978 = vrot.lane.b32.xlu0 %v763, 16
        %v979 = vpop.permute.xlu0 %978
        %980 = vrot.lane.b32.xlu0 %v764, 16
        %v981 = vpop.permute.xlu0 %980
        %982 = vrot.lane.b32.xlu0 %v765, 16
        %v983 = vpop.permute.xlu0 %982
        %992 = vrot.lane.b32.xlu0 %v954, 32
        %v993 = vpop.permute.xlu0 %992
        %994 = vrot.lane.b32.xlu0 %v959, 32
        %v995 = vpop.permute.xlu0 %994
        %996 = vrot.lane.b32.xlu0 %v964, 32
        %v997 = vpop.permute.xlu0 %996
        %998 = vrot.lane.b32.xlu0 %v969, 32
        %v999 = vpop.permute.xlu0 %998
        %v1004 = vsel %vm657, %v857, %v977
        %v1005 = vsel %vm657, %v862, %v979
        %v1006 = vsel %vm657, %v867, %v981
        %v1007 = vsel %vm657, %v872, %v983
        %v1008 = vsel %vm523, %v1004, %v993
        %v1009 = vsel %vm523, %v1005, %v995
        %v1010 = vsel %vm523, %v1006, %v997
        %v1011 = vsel %vm523, %v1007, %v999
        %v1012 = vld [vmem:[#allocation8] sm:$0xff]
        %v1013 = vld [vmem:[#allocation8 + $0x8] sm:$0xff]
        %v1014 = vld [vmem:[#allocation8 + $0x10] sm:$0xff]
        %v1015 = vld [vmem:[#allocation8 + $0x18] sm:$0xff]
        %v1016 = vld [vmem:[#allocation8 + $0x20] sm:$0xff]
        %v1017 = vld [vmem:[#allocation8 + $0x28] sm:$0xff]
        %v1018 = vld [vmem:[%s5] sm:$0x1]
        %v1020 = vlaneseq
        %v1021 = vshrl.u32 %v1020, 7
        %v1022 = vsub.s32 0, %v1021
        %v1023 = vrot.slane %v1018, %v1022
        %vm1025 = vcmask 392192
        %v1027 = vsel %vm1025, %v1008, 0
        %v1030 = vsel %vm1025, %v1009, 0
        %v1033 = vsel %vm1025, %v1010, 0
        %v1036 = vsel %vm1025, %v1011, 0
        %1038 = vmatprep.subr.mxu0 0.0
        %1039 = vmatpush1.msra.mxu0 %v1012
        %1040 = vmatprep.subr.mxu0 0.0
        %1041 = vmatpush1.msra.mxu0 %v1013
        %1042 = vmatprep.subr.mxu0 0.0
        %1043 = vmatpush1.msra.mxu0 %v1014
        %1044 = vmatprep.subr.mxu0 0.0
        %1045 = vmatpush1.msra.mxu0 %v1015
        %1046 = vmatprep.subr.mxu0 0.0
        %1047 = vmatpush1.msra.mxu0 %v1016
        %1048 = vmatprep.subr.mxu0 0.0
        %1049 = vmatpush1.msra.mxu0 %v1017
        %1050 = vmatprep.subr.mxu0 0.0
        %1051 = vmatpush1.msra.mxu0 0.0
        %1052 = vmatprep.subr.mxu0 0.0
        %1053 = vmatpush1.msra.mxu0 0.0
        %1054 = vmatprep.subr.mxu0 0.0
        %1055 = vmatpush1.msra.mxu0 0.0
        %1056 = vmatprep.subr.mxu0 0.0
        %1057 = vmatpush1.msra.mxu0 0.0
        %1058 = vmatprep.subr.mxu0 0.0
        %1059 = vmatpush1.msra.mxu0 0.0
        %1060 = vmatprep.subr.mxu0 0.0
        %1061 = vmatpush1.msra.mxu0 0.0
        %1062 = vmatprep.subr.mxu0 0.0
        %1063 = vmatpush1.msra.mxu0 0.0
        %1064 = vmatprep.subr.mxu0 0.0
        %1065 = vmatpush1.msra.mxu0 0.0
        %1066 = vmatprep.subr.mxu0 0.0
        %1067 = vmatpush1.msra.mxu0 0.0
        %1068 = vmatprep.subr.mxu0 0.0
        %1069 = vmatpush1.msra.mxu0 0.0
        %1070 = vmatprep.subr.mxu0 0.0
        %1071 = vmatpush1.msra.mxu0 0.0
        %1072 = vmatprep.subr.mxu0 0.0
        %1073 = vmatpush1.msra.mxu0 0.0
        %1074 = vmatprep.subr.mxu0 0.0
        %1075 = vmatpush1.msra.mxu0 0.0
        %1076 = vmatprep.subr.mxu0 0.0
        %1077 = vmatpush1.msra.mxu0 0.0
        %1078 = vmatprep.subr.mxu0 0.0
        %1079 = vmatpush1.msra.mxu0 0.0
        %1080 = vmatprep.subr.mxu0 0.0
        %1081 = vmatpush1.msra.mxu0 0.0
        %1082 = vmatprep.subr.mxu0 0.0
        %1083 = vmatpush1.msra.mxu0 0.0
        %1084 = vmatprep.subr.mxu0 0.0
        %1085 = vmatpush1.msra.mxu0 0.0
        %1086 = vmatprep.subr.mxu0 0.0
        %1087 = vmatpush1.msra.mxu0 0.0
        %1088 = vmatprep.subr.mxu0 0.0
        %1089 = vmatpush1.msra.mxu0 0.0
        %1090 = vmatprep.subr.mxu0 0.0
        %1091 = vmatpush1.msra.mxu0 0.0
        %1092 = vmatprep.subr.mxu0 0.0
        %1093 = vmatpush1.msra.mxu0 0.0
        %1094 = vmatprep.subr.mxu0 0.0
        %1095 = vmatpush1.msra.mxu0 0.0
        %1096 = vmatprep.subr.mxu0 0.0
        %1097 = vmatpush1.msra.mxu0 0.0
        %1098 = vmatprep.subr.mxu0 0.0
        %1099 = vmatpush1.msra.mxu0 0.0
        %1100 = vmatprep.subr.mxu0 0.0
        %1101 = vmatpush1.msra.mxu0 0.0
        %1102 = vmatprep.mubr.f32.mxu0 0.0
        %1103 = vmatmul.mubr.f32.gmra.mrb[0].mxu0 %v1027
        %v1104 = vpop.f32.mrb[0].mxu0
        %v1105 = vadd.f32 %v1023, %v1104
        %v1106 = vpop.f32.mrb[0].mxu0
        %1107 = vmatprep.mubr.f32.mxu0 0.0
        %1108 = vmatmul.mubr.f32.gmra.mrb[0].mxu0 %v1030
        %v1109 = vpop.f32.mrb[0].mxu0
        %v1110 = vadd.f32 %v1023, %v1109
        %v1111 = vpop.f32.mrb[0].mxu0
        %1112 = vmatprep.mubr.f32.mxu0 0.0
        %1113 = vmatmul.mubr.f32.gmra.mrb[0].mxu0 %v1033
        %v1114 = vpop.f32.mrb[0].mxu0
        %v1115 = vadd.f32 %v1023, %v1114
        %v1116 = vpop.f32.mrb[0].mxu0
        %1117 = vmatprep.mubr.f32.mxu0 0.0
        %1118 = vmatmul.mubr.f32.gmra.mrb[0].mxu0 %v1036
        %v1119 = vpop.f32.mrb[0].mxu0
        %v1120 = vadd.f32 %v1023, %v1119
        %v1121 = vpop.f32.mrb[0].mxu0
        %1122 = vdwg.mxu0
        %v1123 = vmax.f32 %v1105, 0.0
        %v1124 = vmax.f32 %v1110, 0.0
        %v1125 = vmax.f32 %v1115, 0.0
        %v1126 = vmax.f32 %v1120, 0.0
        %v1127 = vld [vmem:[#allocation10] sm:$0xff]
        %v1128 = vld [vmem:[#allocation10 + $0x8] sm:$0xff]
        %v1129 = vld [vmem:[#allocation10 + $0x10] sm:$0xff]
        %v1130 = vld [vmem:[#allocation10 + $0x18] sm:$0xff]
        %v1131 = vld [vmem:[#allocation10 + $0x20] sm:$0xff]
        %v1132 = vld [vmem:[#allocation10 + $0x28] sm:$0xff]
        %v1133 = vld [vmem:[#allocation10 + $0x30] sm:$0xff]
        %v1134 = vld [vmem:[#allocation10 + $0x38] sm:$0xff]
        %vm1135 = vcmask 523264
        %v1137 = vsel %vm1135, %v1123, 0
        %v1140 = vsel %vm1135, %v1124, 0
        %v1143 = vsel %vm1135, %v1125, 0
        %v1146 = vsel %vm1135, %v1126, 0
        %1148 = vmatprep.subr.mxu0 0.0
        %1149 = vmatpush1.msra.mxu0 %v1127
        %1150 = vmatprep.subr.mxu0 0.0
        %1151 = vmatpush1.msra.mxu0 %v1128
        %1152 = vmatprep.subr.mxu0 0.0
        %1153 = vmatpush1.msra.mxu0 %v1129
        %1154 = vmatprep.subr.mxu0 0.0
        %1155 = vmatpush1.msra.mxu0 %v1130
        %1156 = vmatprep.subr.mxu0 0.0
        %1157 = vmatpush1.msra.mxu0 %v1131
        %1158 = vmatprep.subr.mxu0 0.0
        %1159 = vmatpush1.msra.mxu0 %v1132
        %1160 = vmatprep.subr.mxu0 0.0
        %1161 = vmatpush1.msra.mxu0 %v1133
        %1162 = vmatprep.subr.mxu0 0.0
        %1163 = vmatpush1.msra.mxu0 %v1134
        %1164 = vmatprep.subr.mxu0 0.0
        %1165 = vmatpush1.msra.mxu0 0.0
        %1166 = vmatprep.subr.mxu0 0.0
        %1167 = vmatpush1.msra.mxu0 0.0
        %1168 = vmatprep.subr.mxu0 0.0
        %1169 = vmatpush1.msra.mxu0 0.0
        %1170 = vmatprep.subr.mxu0 0.0
        %1171 = vmatpush1.msra.mxu0 0.0
        %1172 = vmatprep.subr.mxu0 0.0
        %1173 = vmatpush1.msra.mxu0 0.0
        %1174 = vmatprep.subr.mxu0 0.0
        %1175 = vmatpush1.msra.mxu0 0.0
        %1176 = vmatprep.subr.mxu0 0.0
        %1177 = vmatpush1.msra.mxu0 0.0
        %1178 = vmatprep.subr.mxu0 0.0
        %1179 = vmatpush1.msra.mxu0 0.0
        %1180 = vmatprep.subr.mxu0 0.0
        %1181 = vmatpush1.msra.mxu0 0.0
        %1182 = vmatprep.subr.mxu0 0.0
        %1183 = vmatpush1.msra.mxu0 0.0
        %1184 = vmatprep.subr.mxu0 0.0
        %1185 = vmatpush1.msra.mxu0 0.0
        %1186 = vmatprep.subr.mxu0 0.0
        %1187 = vmatpush1.msra.mxu0 0.0
        %1188 = vmatprep.subr.mxu0 0.0
        %1189 = vmatpush1.msra.mxu0 0.0
        %1190 = vmatprep.subr.mxu0 0.0
        %1191 = vmatpush1.msra.mxu0 0.0
        %1192 = vmatprep.subr.mxu0 0.0
        %1193 = vmatpush1.msra.mxu0 0.0
        %1194 = vmatprep.subr.mxu0 0.0
        %1195 = vmatpush1.msra.mxu0 0.0
        %1196 = vmatprep.subr.mxu0 0.0
        %1197 = vmatpush1.msra.mxu0 0.0
        %1198 = vmatprep.subr.mxu0 0.0
        %1199 = vmatpush1.msra.mxu0 0.0
        %1200 = vmatprep.subr.mxu0 0.0
        %1201 = vmatpush1.msra.mxu0 0.0
        %1202 = vmatprep.subr.mxu0 0.0
        %1203 = vmatpush1.msra.mxu0 0.0
        %1204 = vmatprep.subr.mxu0 0.0
        %1205 = vmatpush1.msra.mxu0 0.0
        %1206 = vmatprep.subr.mxu0 0.0
        %1207 = vmatpush1.msra.mxu0 0.0
        %1208 = vmatprep.subr.mxu0 0.0
        %1209 = vmatpush1.msra.mxu0 0.0
        %1210 = vmatprep.subr.mxu0 0.0
        %1211 = vmatpush1.msra.mxu0 0.0
        %1212 = vmatprep.mubr.f32.mxu0 0.0
        %1213 = vmatmul.mubr.f32.gmra.mrb[0].mxu0 %v1137
        %v1214 = vpop.f32.mrb[0].mxu0
        %v1215 = vadd.f32 0.0, %v1214
        %v1216 = vpop.f32.mrb[0].mxu0
        %1217 = vmatprep.mubr.f32.mxu0 0.0
        %1218 = vmatmul.mubr.f32.gmra.mrb[0].mxu0 %v1140
        %v1219 = vpop.f32.mrb[0].mxu0
        %v1220 = vadd.f32 0.0, %v1219
        %v1221 = vpop.f32.mrb[0].mxu0
        %1222 = vmatprep.mubr.f32.mxu0 0.0
        %1223 = vmatmul.mubr.f32.gmra.mrb[0].mxu0 %v1143
        %v1224 = vpop.f32.mrb[0].mxu0
        %v1225 = vadd.f32 0.0, %v1224
        %v1226 = vpop.f32.mrb[0].mxu0
        %1227 = vmatprep.mubr.f32.mxu0 0.0
        %1228 = vmatmul.mubr.f32.gmra.mrb[0].mxu0 %v1146
        %v1229 = vpop.f32.mrb[0].mxu0
        %v1230 = vadd.f32 0.0, %v1229
        %v1231 = vpop.f32.mrb[0].mxu0
        %1232 = vdwg.mxu0
        %1233 = vmatprep.subr.mxu0 0.0
        %1234 = vmatpush1.msra.mxu0 %v1215
        %1235 = vmatprep.subr.mxu0 0.0
        %1236 = vmatpush1.msra.mxu0 %v1220
        %1237 = vmatprep.subr.mxu0 0.0
        %1238 = vmatpush1.msra.mxu0 %v1225
        %1239 = vmatprep.subr.mxu0 0.0
        %1240 = vmatpush1.msra.mxu0 %v1230
        %1241 = vmatprep.subr.mxu0 0.0
        %1242 = vmatpush1.msra.mxu0 0.0
        %1243 = vmatprep.subr.mxu0 0.0
        %1244 = vmatpush1.msra.mxu0 0.0
        %1245 = vmatprep.subr.mxu0 0.0
        %1246 = vmatpush1.msra.mxu0 0.0
        %1247 = vmatprep.subr.mxu0 0.0
        %1248 = vmatpush1.msra.mxu0 0.0
        %1249 = vmatprep.subr.mxu0 0.0
        %1250 = vmatpush1.msra.mxu0 0.0
        %1251 = vmatprep.subr.mxu0 0.0
        %1252 = vmatpush1.msra.mxu0 0.0
        %1253 = vmatprep.subr.mxu0 0.0
        %1254 = vmatpush1.msra.mxu0 0.0
        %1255 = vmatprep.subr.mxu0 0.0
        %1256 = vmatpush1.msra.mxu0 0.0
        %1257 = vmatprep.subr.mxu0 0.0
        %1258 = vmatpush1.msra.mxu0 0.0
        %1259 = vmatprep.subr.mxu0 0.0
        %1260 = vmatpush1.msra.mxu0 0.0
        %1261 = vmatprep.subr.mxu0 0.0
        %1262 = vmatpush1.msra.mxu0 0.0
        %1263 = vmatprep.subr.mxu0 0.0
        %1264 = vmatpush1.msra.mxu0 0.0
        %1265 = vmatprep.subr.mxu0 0.0
        %1266 = vmatpush1.msra.mxu0 0.0
        %1267 = vmatprep.subr.mxu0 0.0
        %1268 = vmatpush1.msra.mxu0 0.0
        %1269 = vmatprep.subr.mxu0 0.0
        %1270 = vmatpush1.msra.mxu0 0.0
        %1271 = vmatprep.subr.mxu0 0.0
        %1272 = vmatpush1.msra.mxu0 0.0
        %1273 = vmatprep.subr.mxu0 0.0
        %1274 = vmatpush1.msra.mxu0 0.0
        %1275 = vmatprep.subr.mxu0 0.0
        %1276 = vmatpush1.msra.mxu0 0.0
        %1277 = vmatprep.subr.mxu0 0.0
        %1278 = vmatpush1.msra.mxu0 0.0
        %1279 = vmatprep.subr.mxu0 0.0
        %1280 = vmatpush1.msra.mxu0 0.0
        %1281 = vmatprep.subr.mxu0 0.0
        %1282 = vmatpush1.msra.mxu0 0.0
        %1283 = vmatprep.subr.mxu0 0.0
        %1284 = vmatpush1.msra.mxu0 0.0
        %1285 = vmatprep.subr.mxu0 0.0
        %1286 = vmatpush1.msra.mxu0 0.0
        %1287 = vmatprep.subr.mxu0 0.0
        %1288 = vmatpush1.msra.mxu0 0.0
        %1289 = vmatprep.subr.mxu0 0.0
        %1290 = vmatpush1.msra.mxu0 0.0
        %1291 = vmatprep.subr.mxu0 0.0
        %1292 = vmatpush1.msra.mxu0 0.0
        %1293 = vmatprep.subr.mxu0 0.0
        %1294 = vmatpush1.msra.mxu0 0.0
        %1295 = vmatprep.subr.mxu0 0.0
        %1296 = vmatpush1.msra.mxu0 0.0
        %1297 = vmatprep.mubr.f32.mxu0 0.0
        %1298 = vmatmul.mubr.f32.gmra.mrb[0].mxu0 %v779
        %v1299 = vpop.f32.mrb[0].mxu0
        %v1300 = vadd.f32 0.0, %v1299
        %v1301 = vpop.f32.mrb[0].mxu0
        %1302 = vmatprep.mubr.f32.mxu0 0.0
        %1303 = vmatmul.mubr.f32.gmra.mrb[0].mxu0 %v782
        %v1304 = vpop.f32.mrb[0].mxu0
        %v1305 = vadd.f32 0.0, %v1304
        %v1306 = vpop.f32.mrb[0].mxu0
        %1307 = vmatprep.mubr.f32.mxu0 0.0
        %1308 = vmatmul.mubr.f32.gmra.mrb[0].mxu0 %v785
        %v1309 = vpop.f32.mrb[0].mxu0
        %v1310 = vadd.f32 0.0, %v1309
        %v1311 = vpop.f32.mrb[0].mxu0
        %1312 = vmatprep.mubr.f32.mxu0 0.0
        %1313 = vmatmul.mubr.f32.gmra.mrb[0].mxu0 %v788
        %v1314 = vpop.f32.mrb[0].mxu0
        %v1315 = vadd.f32 0.0, %v1314
        %v1316 = vpop.f32.mrb[0].mxu0
        %1317 = vdwg.mxu0
        %1318 = vmatprep.subr.mxu0 0.0
        %1319 = vmatpush1.msra.mxu0 %v1215
        %1320 = vmatprep.subr.mxu0 0.0
        %1321 = vmatpush1.msra.mxu0 %v1220
        %1322 = vmatprep.subr.mxu0 0.0
        %1323 = vmatpush1.msra.mxu0 %v1225
        %1324 = vmatprep.subr.mxu0 0.0
        %1325 = vmatpush1.msra.mxu0 %v1230
        %1326 = vmatprep.subr.mxu0 0.0
        %1327 = vmatpush1.msra.mxu0 0.0
        %1328 = vmatprep.subr.mxu0 0.0
        %1329 = vmatpush1.msra.mxu0 0.0
        %1330 = vmatprep.subr.mxu0 0.0
        %1331 = vmatpush1.msra.mxu0 0.0
        %1332 = vmatprep.subr.mxu0 0.0
        %1333 = vmatpush1.msra.mxu0 0.0
        %1334 = vmatprep.subr.mxu0 0.0
        %1335 = vmatpush1.msra.mxu0 0.0
        %1336 = vmatprep.subr.mxu0 0.0
        %1337 = vmatpush1.msra.mxu0 0.0
        %1338 = vmatprep.subr.mxu0 0.0
        %1339 = vmatpush1.msra.mxu0 0.0
        %1340 = vmatprep.subr.mxu0 0.0
        %1341 = vmatpush1.msra.mxu0 0.0
        %1342 = vmatprep.subr.mxu0 0.0
        %1343 = vmatpush1.msra.mxu0 0.0
        %1344 = vmatprep.subr.mxu0 0.0
        %1345 = vmatpush1.msra.mxu0 0.0
        %1346 = vmatprep.subr.mxu0 0.0
        %1347 = vmatpush1.msra.mxu0 0.0
        %1348 = vmatprep.subr.mxu0 0.0
        %1349 = vmatpush1.msra.mxu0 0.0
        %1350 = vmatprep.subr.mxu0 0.0
        %1351 = vmatpush1.msra.mxu0 0.0
        %1352 = vmatprep.subr.mxu0 0.0
        %1353 = vmatpush1.msra.mxu0 0.0
        %1354 = vmatprep.subr.mxu0 0.0
        %1355 = vmatpush1.msra.mxu0 0.0
        %1356 = vmatprep.subr.mxu0 0.0
        %1357 = vmatpush1.msra.mxu0 0.0
        %1358 = vmatprep.subr.mxu0 0.0
        %1359 = vmatpush1.msra.mxu0 0.0
        %1360 = vmatprep.subr.mxu0 0.0
        %1361 = vmatpush1.msra.mxu0 0.0
        %1362 = vmatprep.subr.mxu0 0.0
        %1363 = vmatpush1.msra.mxu0 0.0
        %1364 = vmatprep.subr.mxu0 0.0
        %1365 = vmatpush1.msra.mxu0 0.0
        %1366 = vmatprep.subr.mxu0 0.0
        %1367 = vmatpush1.msra.mxu0 0.0
        %1368 = vmatprep.subr.mxu0 0.0
        %1369 = vmatpush1.msra.mxu0 0.0
        %1370 = vmatprep.subr.mxu0 0.0
        %1371 = vmatpush1.msra.mxu0 0.0
        %1372 = vmatprep.subr.mxu0 0.0
        %1373 = vmatpush1.msra.mxu0 0.0
        %1374 = vmatprep.subr.mxu0 0.0
        %1375 = vmatpush1.msra.mxu0 0.0
        %1376 = vmatprep.subr.mxu0 0.0
        %1377 = vmatpush1.msra.mxu0 0.0
        %1378 = vmatprep.subr.mxu0 0.0
        %1379 = vmatpush1.msra.mxu0 0.0
        %1380 = vmatprep.subr.mxu0 0.0
        %1381 = vmatpush1.msra.mxu0 0.0
        %1382 = vmatprep.mubr.f32.mxu0 0.0
        %1383 = vmatmul.mubr.f32.gmra.mrb[0].mxu0 %v876
        %v1384 = vpop.f32.mrb[0].mxu0
        %v1385 = vadd.f32 0.0, %v1384
        %v1386 = vpop.f32.mrb[0].mxu0
        %1387 = vmatprep.mubr.f32.mxu0 0.0
        %1388 = vmatmul.mubr.f32.gmra.mrb[0].mxu0 %v879
        %v1389 = vpop.f32.mrb[0].mxu0
        %v1390 = vadd.f32 0.0, %v1389
        %v1391 = vpop.f32.mrb[0].mxu0
        %1392 = vmatprep.mubr.f32.mxu0 0.0
        %1393 = vmatmul.mubr.f32.gmra.mrb[0].mxu0 %v882
        %v1394 = vpop.f32.mrb[0].mxu0
        %v1395 = vadd.f32 0.0, %v1394
        %v1396 = vpop.f32.mrb[0].mxu0
        %1397 = vmatprep.mubr.f32.mxu0 0.0
        %1398 = vmatmul.mubr.f32.gmra.mrb[0].mxu0 %v885
        %v1399 = vpop.f32.mrb[0].mxu0
        %v1400 = vadd.f32 0.0, %v1399
        %v1401 = vpop.f32.mrb[0].mxu0
        %1402 = vdwg.mxu0
        %1407 = vrot.lane.b32.xlu0 %v1215, 32
        %v1408 = vpop.permute.xlu0 %1407
        %1409 = vrot.lane.b32.xlu0 %v1220, 32
        %v1410 = vpop.permute.xlu0 %1409
        %1411 = vrot.lane.b32.xlu0 %v1225, 32
        %v1412 = vpop.permute.xlu0 %1411
        %1413 = vrot.lane.b32.xlu0 %v1230, 32
        %v1414 = vpop.permute.xlu0 %1413
        %1423 = vrot.lane.b32.xlu0 %v1385, 64
        %v1424 = vpop.permute.xlu0 %1423
        %1425 = vrot.lane.b32.xlu0 %v1390, 64
        %v1426 = vpop.permute.xlu0 %1425
        %1427 = vrot.lane.b32.xlu0 %v1395, 64
        %v1428 = vpop.permute.xlu0 %1427
        %1429 = vrot.lane.b32.xlu0 %v1400, 64
        %v1430 = vpop.permute.xlu0 %1429
        %v1435 = vsel %vm523, %v1300, %v1408
        %v1436 = vsel %vm523, %v1305, %v1410
        %v1437 = vsel %vm523, %v1310, %v1412
        %v1438 = vsel %vm523, %v1315, %v1414
        %v1439 = vsel %vm1135, %v1435, %v1424
        %v1440 = vsel %vm1135, %v1436, %v1426
        %v1441 = vsel %vm1135, %v1437, %v1428
        %v1442 = vsel %vm1135, %v1438, %v1430
        %v1443 = vld [vmem:[%s7] sm:$0xff]
        %v1444 = vld [vmem:[%s7 + $0x8] sm:$0xff]
        %v1445 = vld [vmem:[%s7 + $0x10] sm:$0xff]
        %v1446 = vld [vmem:[%s7 + $0x18] sm:$0xff]
        %v1447 = vld [vmem:[%s7 + $0x20] sm:$0xff]
        %v1448 = vld [vmem:[%s7 + $0x28] sm:$0xff]
        %v1449 = vld [vmem:[%s7 + $0x30] sm:$0xff]
        %v1450 = vld [vmem:[%s7 + $0x38] sm:$0xff]
        %v1451 = vld [vmem:[%s7 + $0x40] sm:$0xff]
        %v1452 = vld [vmem:[%s7 + $0x48] sm:$0xff]
        %v1453 = vld [vmem:[%s7 + $0x50] sm:$0xff]
        %v1454 = vld [vmem:[%s7 + $0x58] sm:$0xff]
        %v1455 = vld [vmem:[%s8] sm:$0x1]
        %v1457 = vlaneseq
        %v1458 = vshrl.u32 %v1457, 7
        %v1459 = vsub.s32 0, %v1458
        %v1460 = vrot.slane %v1455, %v1459
        %vm1462 = vcmask 785408
        %v1464 = vsel %vm1462, %v1439, 0
        %v1467 = vsel %vm1462, %v1440, 0
        %v1470 = vsel %vm1462, %v1441, 0
        %v1473 = vsel %vm1462, %v1442, 0
        %1475 = vmatprep.subr.mxu0 0.0
        %1476 = vmatpush1.msra.mxu0 %v1443
        %1477 = vmatprep.subr.mxu0 0.0
        %1478 = vmatpush1.msra.mxu0 %v1444
        %1479 = vmatprep.subr.mxu0 0.0
        %1480 = vmatpush1.msra.mxu0 %v1445
        %1481 = vmatprep.subr.mxu0 0.0
        %1482 = vmatpush1.msra.mxu0 %v1446
        %1483 = vmatprep.subr.mxu0 0.0
        %1484 = vmatpush1.msra.mxu0 %v1447
        %1485 = vmatprep.subr.mxu0 0.0
        %1486 = vmatpush1.msra.mxu0 %v1448
        %1487 = vmatprep.subr.mxu0 0.0
        %1488 = vmatpush1.msra.mxu0 %v1449
        %1489 = vmatprep.subr.mxu0 0.0
        %1490 = vmatpush1.msra.mxu0 %v1450
        %1491 = vmatprep.subr.mxu0 0.0
        %1492 = vmatpush1.msra.mxu0 %v1451
        %1493 = vmatprep.subr.mxu0 0.0
        %1494 = vmatpush1.msra.mxu0 %v1452
        %1495 = vmatprep.subr.mxu0 0.0
        %1496 = vmatpush1.msra.mxu0 %v1453
        %1497 = vmatprep.subr.mxu0 0.0
        %1498 = vmatpush1.msra.mxu0 %v1454
        %1499 = vmatprep.subr.mxu0 0.0
        %1500 = vmatpush1.msra.mxu0 0.0
        %1501 = vmatprep.subr.mxu0 0.0
        %1502 = vmatpush1.msra.mxu0 0.0
        %1503 = vmatprep.subr.mxu0 0.0
        %1504 = vmatpush1.msra.mxu0 0.0
        %1505 = vmatprep.subr.mxu0 0.0
        %1506 = vmatpush1.msra.mxu0 0.0
        %1507 = vmatprep.subr.mxu0 0.0
        %1508 = vmatpush1.msra.mxu0 0.0
        %1509 = vmatprep.subr.mxu0 0.0
        %1510 = vmatpush1.msra.mxu0 0.0
        %1511 = vmatprep.subr.mxu0 0.0
        %1512 = vmatpush1.msra.mxu0 0.0
        %1513 = vmatprep.subr.mxu0 0.0
        %1514 = vmatpush1.msra.mxu0 0.0
        %1515 = vmatprep.subr.mxu0 0.0
        %1516 = vmatpush1.msra.mxu0 0.0
        %1517 = vmatprep.subr.mxu0 0.0
        %1518 = vmatpush1.msra.mxu0 0.0
        %1519 = vmatprep.subr.mxu0 0.0
        %1520 = vmatpush1.msra.mxu0 0.0
        %1521 = vmatprep.subr.mxu0 0.0
        %1522 = vmatpush1.msra.mxu0 0.0
        %1523 = vmatprep.subr.mxu0 0.0
        %1524 = vmatpush1.msra.mxu0 0.0
        %1525 = vmatprep.subr.mxu0 0.0
        %1526 = vmatpush1.msra.mxu0 0.0
        %1527 = vmatprep.subr.mxu0 0.0
        %1528 = vmatpush1.msra.mxu0 0.0
        %1529 = vmatprep.subr.mxu0 0.0
        %1530 = vmatpush1.msra.mxu0 0.0
        %1531 = vmatprep.subr.mxu0 0.0
        %1532 = vmatpush1.msra.mxu0 0.0
        %1533 = vmatprep.subr.mxu0 0.0
        %1534 = vmatpush1.msra.mxu0 0.0
        %1535 = vmatprep.subr.mxu0 0.0
        %1536 = vmatpush1.msra.mxu0 0.0
        %1537 = vmatprep.subr.mxu0 0.0
        %1538 = vmatpush1.msra.mxu0 0.0
        %1539 = vmatprep.mubr.f32.mxu0 0.0
        %1540 = vmatmul.mubr.f32.gmra.mrb[0].mxu0 %v1464
        %v1541 = vpop.f32.mrb[0].mxu0
        %v1542 = vadd.f32 %v1460, %v1541
        %v1543 = vpop.f32.mrb[0].mxu0
        %1544 = vmatprep.mubr.f32.mxu0 0.0
        %1545 = vmatmul.mubr.f32.gmra.mrb[0].mxu0 %v1467
        %v1546 = vpop.f32.mrb[0].mxu0
        %v1547 = vadd.f32 %v1460, %v1546
        %v1548 = vpop.f32.mrb[0].mxu0
        %1549 = vmatprep.mubr.f32.mxu0 0.0
        %1550 = vmatmul.mubr.f32.gmra.mrb[0].mxu0 %v1470
        %v1551 = vpop.f32.mrb[0].mxu0
        %v1552 = vadd.f32 %v1460, %v1551
        %v1553 = vpop.f32.mrb[0].mxu0
        %1554 = vmatprep.mubr.f32.mxu0 0.0
        %1555 = vmatmul.mubr.f32.gmra.mrb[0].mxu0 %v1473
        %v1556 = vpop.f32.mrb[0].mxu0
        %v1557 = vadd.f32 %v1460, %v1556
        %v1558 = vpop.f32.mrb[0].mxu0
        %1559 = vdwg.mxu0
        %v1560 = vmax.f32 %v1542, 0.0
        %v1561 = vmax.f32 %v1547, 0.0
        %v1562 = vmax.f32 %v1552, 0.0
        %v1563 = vmax.f32 %v1557, 0.0
        %v1564 = vld [vmem:[#allocation11] sm:$0xff]
        %v1565 = vld [vmem:[#allocation11 + $0x8] sm:$0xff]
        %v1566 = vld [vmem:[#allocation11 + $0x10] sm:$0xff]
        %v1567 = vld [vmem:[#allocation11 + $0x18] sm:$0xff]
        %v1568 = vld [vmem:[%s10] sm:$0x1]
        %v1570 = vlaneseq
        %v1571 = vshrl.u32 %v1570, 7
        %v1572 = vsub.s32 0, %v1571
        %v1573 = vrot.slane %v1568, %v1572
        %v1576 = vsel %vm523, %v1560, 0
        %v1579 = vsel %vm523, %v1561, 0
        %v1582 = vsel %vm523, %v1562, 0
        %v1585 = vsel %vm523, %v1563, 0
        %1587 = vmatprep.subr.mxu0 0.0
        %1588 = vmatpush1.msra.mxu0 %v1564
        %1589 = vmatprep.subr.mxu0 0.0
        %1590 = vmatpush1.msra.mxu0 %v1565
        %1591 = vmatprep.subr.mxu0 0.0
        %1592 = vmatpush1.msra.mxu0 %v1566
        %1593 = vmatprep.subr.mxu0 0.0
        %1594 = vmatpush1.msra.mxu0 %v1567
        %1595 = vmatprep.subr.mxu0 0.0
        %1596 = vmatpush1.msra.mxu0 0.0
        %1597 = vmatprep.subr.mxu0 0.0
        %1598 = vmatpush1.msra.mxu0 0.0
        %1599 = vmatprep.subr.mxu0 0.0
        %1600 = vmatpush1.msra.mxu0 0.0
        %1601 = vmatprep.subr.mxu0 0.0
        %1602 = vmatpush1.msra.mxu0 0.0
        %1603 = vmatprep.subr.mxu0 0.0
        %1604 = vmatpush1.msra.mxu0 0.0
        %1605 = vmatprep.subr.mxu0 0.0
        %1606 = vmatpush1.msra.mxu0 0.0
        %1607 = vmatprep.subr.mxu0 0.0
        %1608 = vmatpush1.msra.mxu0 0.0
        %1609 = vmatprep.subr.mxu0 0.0
        %1610 = vmatpush1.msra.mxu0 0.0
        %1611 = vmatprep.subr.mxu0 0.0
        %1612 = vmatpush1.msra.mxu0 0.0
        %1613 = vmatprep.subr.mxu0 0.0
        %1614 = vmatpush1.msra.mxu0 0.0
        %1615 = vmatprep.subr.mxu0 0.0
        %1616 = vmatpush1.msra.mxu0 0.0
        %1617 = vmatprep.subr.mxu0 0.0
        %1618 = vmatpush1.msra.mxu0 0.0
        %1619 = vmatprep.subr.mxu0 0.0
        %1620 = vmatpush1.msra.mxu0 0.0
        %1621 = vmatprep.subr.mxu0 0.0
        %1622 = vmatpush1.msra.mxu0 0.0
        %1623 = vmatprep.subr.mxu0 0.0
        %1624 = vmatpush1.msra.mxu0 0.0
        %1625 = vmatprep.subr.mxu0 0.0
        %1626 = vmatpush1.msra.mxu0 0.0
        %1627 = vmatprep.subr.mxu0 0.0
        %1628 = vmatpush1.msra.mxu0 0.0
        %1629 = vmatprep.subr.mxu0 0.0
        %1630 = vmatpush1.msra.mxu0 0.0
        %1631 = vmatprep.subr.mxu0 0.0
        %1632 = vmatpush1.msra.mxu0 0.0
        %1633 = vmatprep.subr.mxu0 0.0
        %1634 = vmatpush1.msra.mxu0 0.0
        %1635 = vmatprep.subr.mxu0 0.0
        %1636 = vmatpush1.msra.mxu0 0.0
        %1637 = vmatprep.subr.mxu0 0.0
        %1638 = vmatpush1.msra.mxu0 0.0
        %1639 = vmatprep.subr.mxu0 0.0
        %1640 = vmatpush1.msra.mxu0 0.0
        %1641 = vmatprep.subr.mxu0 0.0
        %1642 = vmatpush1.msra.mxu0 0.0
        %1643 = vmatprep.subr.mxu0 0.0
        %1644 = vmatpush1.msra.mxu0 0.0
        %1645 = vmatprep.subr.mxu0 0.0
        %1646 = vmatpush1.msra.mxu0 0.0
        %1647 = vmatprep.subr.mxu0 0.0
        %1648 = vmatpush1.msra.mxu0 0.0
        %1649 = vmatprep.subr.mxu0 0.0
        %1650 = vmatpush1.msra.mxu0 0.0
        %1651 = vmatprep.mubr.f32.mxu0 0.0
        %1652 = vmatmul.mubr.f32.gmra.mrb[0].mxu0 %v1576
        %v1653 = vpop.f32.mrb[0].mxu0
        %v1654 = vadd.f32 %v1573, %v1653
        %v1655 = vpop.f32.mrb[0].mxu0
        %1656 = vmatprep.mubr.f32.mxu0 0.0
        %1657 = vmatmul.mubr.f32.gmra.mrb[0].mxu0 %v1579
        %v1658 = vpop.f32.mrb[0].mxu0
        %v1659 = vadd.f32 %v1573, %v1658
        %v1660 = vpop.f32.mrb[0].mxu0
        %1661 = vmatprep.mubr.f32.mxu0 0.0
        %1662 = vmatmul.mubr.f32.gmra.mrb[0].mxu0 %v1582
        %v1663 = vpop.f32.mrb[0].mxu0
        %v1664 = vadd.f32 %v1573, %v1663
        %v1665 = vpop.f32.mrb[0].mxu0
        %1666 = vmatprep.mubr.f32.mxu0 0.0
        %1667 = vmatmul.mubr.f32.gmra.mrb[0].mxu0 %v1585
        %v1668 = vpop.f32.mrb[0].mxu0
        %v1669 = vadd.f32 %v1573, %v1668
        %v1670 = vpop.f32.mrb[0].mxu0
        %1671 = vdwg.mxu0
        %1672 = vst [vmem:[%s506] sm:$0xff] %v1654
        %1673 = vst [vmem:[%s506 + $0x8] sm:$0xff] %v1659
        %1674 = vst [vmem:[%s506 + $0x10] sm:$0xff] %v1664
        %1675 = vst [vmem:[%s506 + $0x18] sm:$0xff] %v1669
        %s1676 = sand.u32 %s278, 1
        %s1677 = scalar_lea.sflag [#allocation4], %s1676
        %s1678 = sand.u32 %s278, 1
        %s1679 = smul.addr %s1678, 32
        %s1680 = scalar_lea.vmem [#allocation13], %s1679
        %s1681 = sand.u32 %s304, 1
        %s1682 = scalar_lea.sflag [#allocation15], %s1681
        %s1683 = sand.u32 %s304, 1
        %s1684 = smul.addr %s1683, 32
        %s1685 = scalar_lea.vmem [#allocation14], %s1684
        // Predicated region
        $region89: #{_lambda_.1} parent=63 // pred_check
          %p1686 = pneg %p288
        $region90: #{_lambda_.1} parent=63 // pred_check_branch
          %1688 = sbr.rel (%p1686) target = $region92
        $region91: #{_lambda_.1} parent=63 // pred_region
          %s1689 = smul.u32 4, %s34
          %s1691 = ssub.s32 512, 512
          %1692 = vsyncadd %s1677, %s1691
          %s1693 = smul.addr %s1689, 128
          %s1694 = scalar_lea.hbm %s11, %s1693
          %s1695 = sshll.u32 %s1680, 4
          %s1696 = int_to_ptr.vmem [resolvable:$true] %s1695
          %1701 = dma.vmem_to_hbm [thread:$0]  %s1696, 512, %s1694, %s1677, 128, 128, 8
        $region92: #{_lambda_.1} parent=63 // pred_fallthru
          _
        // Predicated region
        $region93: #{_lambda_.1} parent=63 // pred_check
          %p1702 = pneg %p314
        $region94: #{_lambda_.1} parent=63 // pred_check_branch
          %1704 = sbr.rel (%p1702) target = $region96
        $region95: #{_lambda_.1} parent=63 // pred_region
          %s1705 = smul.u32 4, %s34
          %s1707 = ssub.s32 512, 512
          %1708 = vsyncadd %s1682, %s1707
          %s1709 = smul.addr %s1705, 128
          %s1710 = scalar_lea.hbm %s12, %s1709
          %s1711 = sshll.u32 %s1685, 4
          %s1712 = int_to_ptr.vmem [resolvable:$true] %s1711
          %1717 = dma.vmem_to_hbm [thread:$0]  %s1712, 512, %s1710, %s1682, 128, 128, 8
        $region96: #{_lambda_.1} parent=63 // pred_fallthru
          _
      $region64: #{_lambda_.1} parent=5 // pred_fallthru
        _
      %p1718 = scmp.le.s32.totalorder 2, %s29
      // Predicated region
      $region97: #{_lambda_.1} parent=5 // pred_check
        %p1719 = pneg %p1718
      $region98: #{_lambda_.1} parent=5 // pred_check_branch
        %1721 = sbr.rel (%p1719) target = $region100
      $region99: #{_lambda_.1} parent=5 // pred_region
        %s1722 = ssub.s32 %s29, 2
        // Predicated region
        $region101: #{_lambda_.1} parent=99 // pred_check
          %p1723 = pneg %p294
        $region102: #{_lambda_.1} parent=99 // pred_check_branch
          %1725 = sbr.rel (%p1723) target = $region104
        $region103: #{_lambda_.1} parent=99 // pred_region
          %s1726 = sand.u32 %s279, 1
          %s1727 = scalar_lea.sflag [#allocation4], %s1726
          %s1728 = sand.u32 %s279, 1
          %s1729 = smul.addr %s1728, 32
          %s1730 = scalar_lea.vmem [#allocation13], %s1729
          %1731 = dma.done %s1727, 512
        $region104: #{_lambda_.1} parent=99 // pred_fallthru
          _
        // Predicated region
        $region105: #{_lambda_.1} parent=99 // pred_check
          %p1732 = pneg %p320
        $region106: #{_lambda_.1} parent=99 // pred_check_branch
          %1734 = sbr.rel (%p1732) target = $region108
        $region107: #{_lambda_.1} parent=99 // pred_region
          %s1735 = sand.u32 %s305, 1
          %s1736 = scalar_lea.sflag [#allocation15], %s1735
          %s1737 = sand.u32 %s305, 1
          %s1738 = smul.addr %s1737, 32
          %s1739 = scalar_lea.vmem [#allocation14], %s1738
          %1740 = dma.done %s1736, 512
        $region108: #{_lambda_.1} parent=99 // pred_fallthru
          _
      $region100: #{_lambda_.1} parent=5 // pred_fallthru
        _
    $region6: #{_lambda_.1} parent=1 // loop_footer
      %s33 = sadd.s32 1, %s29
    $region7: #{_lambda_.1} parent=1 // loop_footer_branch
      %28 = sbr.rel target = $region3
    $region8: #{_lambda_.1} parent=1 // loop_exit
      _
    %1741 = vsyncpa [#allocation3], 1
    %s1742 = scalar_lea.sflag [#allocation3], 1
    %1743 = vsyncpa %s1742, 1
    %1744 = vsyncpa [#allocation6], 1
    %1745 = vsyncpa [#allocation9], 1
    %1746 = vsyncpa [#allocation12], 1
    %1747 = vsyncpa [#allocation4], 1
    %s1748 = scalar_lea.sflag [#allocation4], 1
    %1749 = vsyncpa %s1748, 1
    %1750 = vsyncpa [#allocation15], 1
    %s1751 = scalar_lea.sflag [#allocation15], 1
    %1752 = vsyncpa %s1751, 1

</llo_original>
